<compile_context>
chip_gen: v6e
topology: v6e:2x2x1
jax: 0.10.0
libtpu: 0.0.40
codegen_flags: <defaults>
</compile_context>

<pallas_src>
import functools
import math

import jax
import jax.numpy as jnp
from jax.experimental import pallas as pl
from jax.experimental.pallas import tpu as pltpu

VEC = 5          # CharToVec vector size (from the module)
VEC_PAD = 8      # pad the tiny contraction dim 5 -> 8 (zeros, math-identical)
SUB_BATCH = 5    # sub_rnn batch size (hard-coded to 5 in the module)
SUB_PAD = 8      # pad the sub-rnn batch 5 -> 8 (sublane-aligned slabs)
HIDDEN = 128     # hidden_dim (must be 128: sub_rnn_output=128 is hard-coded)
OUT_SIZE = 16    # output_size
VOCAB = 64
N_LAYERS = 1     # single-layer nn.RNN => init_hidden n_layers must be 1

F32 = jnp.float32
# bf16 operands + f32 accumulation on the serial recurrence matmuls (perf
# review); set to jnp.float32 for bit-faithful f32 module numerics.
RECUR_MM_DTYPE = jnp.bfloat16


def proofreader_kernel(x_ref, swih_ref, swhh_ref, sb_ref,
                       rwih_ref, rwhh_ref, rb_ref,
                       fcw_ref, fcb_ref, out_ref,
                       xproj_ref, last_ref, proj_ref,
                       *, batch, seq):
    H = HIDDEN
    mm_dt = RECUR_MM_DTYPE

    # ---- hoisted sub-RNN input projection (one dense MXU matmul, bias folded
    # in), materialized into VMEM scratch so the large intermediate is not kept
    # live in vregs across the fully unrolled recurrence.
    # x_ref is (batch*seq*SUB_PAD, VEC_PAD), sublane dense.
    xproj_ref[...] = (
        jnp.dot(x_ref[...], swih_ref[...], preferred_element_type=F32)
        + sb_ref[...]
    ).reshape(batch * seq, SUB_PAD, H)

    # Recurrence weight, cast once outside the loops.
    swhh = swhh_ref[...].astype(mm_dt)                     # (H, H)

    # ---- sub_rnn recurrence: exactly one (8,128)x(128,128) matmul + tanh per
    # step on the serial chain; the RHS (swhh) is the only MXU weight used for
    # the whole B*S chain (rwih projection is deferred below).  The hidden
    # state carries across outer batch elements, exactly like the PyTorch loop
    # that reuses `sub_hidden`.  Rows 5..7 are padding, never read.
    sub_h = jnp.zeros((SUB_PAD, H), F32)
    for b in range(batch):                                 # static unroll
        for t in range(seq):                               # static unroll
            xp = xproj_ref[b * seq + t]                    # (8,128) tile load
            sub_h = jnp.tanh(
                xp + jnp.dot(sub_h.astype(mm_dt), swhh,
                             preferred_element_type=F32))
        # Store this element's final hidden: whole-tile unmasked write; the
        # main-RNN input projection is NOT done here (no MXU weight swap).
        last_ref[b] = sub_h

    # ---- deferred main-RNN input projection: ONE dense (B*8,128)x(128,128)
    # matmul + bias, off the serial chain.  Stored (b, t, :) so each main-RNN
    # step below reads a single (batch, H) sublane slab.
    proj_ref[...] = (
        jnp.dot(last_ref[...].reshape(batch * SUB_PAD, H), rwih_ref[...],
                preferred_element_type=F32)
        + rb_ref[...]
    ).reshape(batch, SUB_PAD, H)

    # ---- main rnn: 5 steps, one matmul + tanh per step on the chain.
    rwhh = rwhh_ref[...].astype(mm_dt)                     # (H, H)
    h = jnp.zeros((batch, H), F32)
    for t in range(SUB_BATCH):                             # static unroll
        xt = proj_ref[:, t, :]                             # (batch, H)
        h = jnp.tanh(xt + jnp.dot(h.astype(mm_dt), rwhh,
                                  preferred_element_type=F32))

    # ---- fc on the last timestep output (f32).
    out_ref[...] = (jnp.dot(h, fcw_ref[...], preferred_element_type=F32)
                    + fcb_ref[...])


def init_params(key):
    ks = jax.random.split(key, 10)
    bound = 1.0 / math.sqrt(HIDDEN)

    def u(k, shape, b):
        return jax.random.uniform(k, shape, F32, -b, b)

    return {
        "char_emb": u(ks[0], (VOCAB, VEC), 1.0),
        "sub_w_ih": u(ks[1], (VEC, HIDDEN), bound),
        "sub_w_hh": u(ks[2], (HIDDEN, HIDDEN), bound),
        "sub_b":    u(ks[3], (1, HIDDEN), bound),      # b_ih + b_hh combined
        "rnn_w_ih": u(ks[4], (HIDDEN, HIDDEN), bound),
        "rnn_w_hh": u(ks[5], (HIDDEN, HIDDEN), bound),
        "rnn_b":    u(ks[6], (1, HIDDEN), bound),      # b_ih + b_hh combined
        "fc_w":     u(ks[7], (HIDDEN, OUT_SIZE), bound),
        "fc_b":     u(ks[8], (1, OUT_SIZE), bound),
    }


def proofreader_forward(x_chars, params):
    """x_chars: int32 (B, 5, S) character indices."""
    # --- glue: CharToVec encoder (approximated as an embedding lookup).
    x_enc = params["char_emb"][x_chars]                 # (B, 5, S, 5)
    B, S = x_enc.shape[0], x_enc.shape[2]
    # kernel layout: sublane-dense (B*S*SUB_PAD, VEC_PAD); zero-pad the
    # sub-batch 5->8 and the char vector 5->8 (padding is mathematically inert).
    x_enc = jnp.transpose(x_enc, (0, 2, 1, 3))          # (B, S, 5, 5)
    x_enc = jnp.pad(x_enc, ((0, 0), (0, 0),
                            (0, SUB_PAD - SUB_BATCH), (0, VEC_PAD - VEC)))
    x2d = x_enc.reshape(B * S * SUB_PAD, VEC_PAD)
    sub_w_ih = jnp.pad(params["sub_w_ih"],
                       ((0, VEC_PAD - VEC), (0, 0)))    # (8, H), zero rows

    vmem = pl.BlockSpec(memory_space=pltpu.MemorySpace.VMEM)
    out = pl.pallas_call(
        functools.partial(proofreader_kernel, batch=B, seq=S),
        out_shape=jax.ShapeDtypeStruct((B, OUT_SIZE), F32),
        in_specs=[vmem] * 9,
        out_specs=vmem,
        scratch_shapes=[
            pltpu.VMEM((B * S, SUB_PAD, HIDDEN), F32),   # hoisted x projection
            pltpu.VMEM((B, SUB_PAD, HIDDEN), F32),       # per-b final sub_h
            pltpu.VMEM((B, SUB_PAD, HIDDEN), F32),       # deferred rwih proj
        ],
    )(x2d,
      sub_w_ih, params["sub_w_hh"], params["sub_b"],
      params["rnn_w_ih"], params["rnn_w_hh"], params["rnn_b"],
      params["fc_w"], params["fc_b"])
    return out


def proofreader_reference(x_chars, params):
    """Pure-JAX f32 reference mirroring the PyTorch loop structure exactly."""
    x_enc = params["char_emb"][x_chars]                 # (B, 5, S, 5)
    B, S = x_enc.shape[0], x_enc.shape[2]
    sub_h = jnp.zeros((SUB_BATCH, HIDDEN), F32)
    sub_last = []
    for b in range(B):
        for t in range(S):
            xt = x_enc[b, :, t, :]                      # (5, 5)
            sub_h = jnp.tanh(xt @ params["sub_w_ih"]
                             + sub_h @ params["sub_w_hh"] + params["sub_b"])
        sub_last.append(sub_h)
    h = jnp.zeros((B, HIDDEN), F32)
    for t in range(SUB_BATCH):
        xt = jnp.stack([sub_last[b][t] for b in range(B)], axis=0)
        h = jnp.tanh(xt @ params["rnn_w_ih"]
                     + h @ params["rnn_w_hh"] + params["rnn_b"])
    return h @ params["fc_w"] + params["fc_b"]


if __name__ == "__main__":
    key = jax.random.PRNGKey(0)
    pkey, xkey = jax.random.split(key)
    params = init_params(pkey)

    B, S = 2, 8
    x_chars = jax.random.randint(xkey, (B, SUB_BATCH, S), 0, VOCAB,
                                 dtype=jnp.int32)

    out = proofreader_forward(x_chars, params)
    out = jax.block_until_ready(out)
    assert out.shape == (B, OUT_SIZE) and out.dtype == F32

    ref = jax.block_until_ready(proofreader_reference(x_chars, params))
    # bf16 recurrence matmuls (perf review) drift slightly from the f32
    # PyTorch numerics; the structure is otherwise mathematically identical.
    tol = 1e-2 if RECUR_MM_DTYPE == jnp.bfloat16 else 2e-3
    assert jnp.allclose(out, ref, rtol=tol, atol=tol), \
        float(jnp.max(jnp.abs(out - ref)))

    print("KERNEL_OK")
</pallas_src>

<mosaic_0001>
module attributes {stable_mosaic.version = 11 : i64} {
  func.func @proofreader_kernel(%arg0: memref<128x8xf32, #tpu.memory_space<vmem>>, %arg1: memref<8x128xf32, #tpu.memory_space<vmem>>, %arg2: memref<128x128xf32, #tpu.memory_space<vmem>>, %arg3: memref<1x128xf32, #tpu.memory_space<vmem>>, %arg4: memref<128x128xf32, #tpu.memory_space<vmem>>, %arg5: memref<128x128xf32, #tpu.memory_space<vmem>>, %arg6: memref<1x128xf32, #tpu.memory_space<vmem>>, %arg7: memref<128x16xf32, #tpu.memory_space<vmem>>, %arg8: memref<1x16xf32, #tpu.memory_space<vmem>>, %arg9: memref<2x16xf32, #tpu.memory_space<vmem>>, %arg10: memref<16x8x128xf32, #tpu.memory_space<vmem>>, %arg11: memref<2x8x128xf32, #tpu.memory_space<vmem>>, %arg12: memref<2x8x128xf32, #tpu.memory_space<vmem>>) attributes {dimension_semantics = [], scalar_prefetch = 0 : i64, scratch_operands = 3 : i64, tpu.core_type = #tpu.core_type<tc>} {
    %c0 = arith.constant 0 : index
    %c0_0 = arith.constant 0 : index
    %0 = vector.load %arg0[%c0, %c0_0] : memref<128x8xf32, #tpu.memory_space<vmem>>, vector<128x8xf32>
    %c0_1 = arith.constant 0 : index
    %c0_2 = arith.constant 0 : index
    %1 = vector.load %arg1[%c0_1, %c0_2] : memref<8x128xf32, #tpu.memory_space<vmem>>, vector<8x128xf32>
    %cst = arith.constant dense<0.000000e+00> : vector<128x128xf32>
    %2 = tpu.matmul %0, %1, %cst {dimension_numbers = #tpu.dot_dimension_numbers<[1], [0], [0], [1], [0, 0, 1, 1], [], []>} : vector<128x8xf32>, vector<8x128xf32>, vector<128x128xf32> -> vector<128x128xf32>
    %c0_3 = arith.constant 0 : index
    %c0_4 = arith.constant 0 : index
    %3 = vector.load %arg3[%c0_3, %c0_4] : memref<1x128xf32, #tpu.memory_space<vmem>>, vector<1x128xf32>
    %4 = vector.broadcast %3 : vector<1x128xf32> to vector<128x128xf32>
    %5 = arith.addf %2, %4 : vector<128x128xf32>
    %6 = vector.shape_cast %5 : vector<128x128xf32> to vector<16x8x128xf32>
    %c0_5 = arith.constant 0 : index
    %c0_6 = arith.constant 0 : index
    %c0_7 = arith.constant 0 : index
    %7 = vector.load %arg10[%c0_5, %c0_6, %c0_7] : memref<16x8x128xf32, #tpu.memory_space<vmem>>, vector<16x8x128xf32>
    tpu.vector_store %arg10[%c0_5, %c0_6, %c0_7], %6 {strides = array<i32>} : memref<16x8x128xf32, #tpu.memory_space<vmem>>, vector<16x8x128xf32>,
    %c0_8 = arith.constant 0 : index
    %c0_9 = arith.constant 0 : index
    %8 = vector.load %arg2[%c0_8, %c0_9] : memref<128x128xf32, #tpu.memory_space<vmem>>, vector<128x128xf32>
    %9 = arith.truncf %8 : vector<128x128xf32> to vector<128x128xbf16>
    %cst_10 = arith.constant 0.000000e+00 : f32
    %10 = vector.broadcast %cst_10 : f32 to vector<8x128xf32>
    %c0_11 = arith.constant 0 : index
    %c0_12 = arith.constant 0 : index
    %c0_13 = arith.constant 0 : index
    %11 = vector.load %arg10[%c0_11, %c0_12, %c0_13] : memref<16x8x128xf32, #tpu.memory_space<vmem>>, vector<1x8x128xf32>
    %12 = vector.shape_cast %11 : vector<1x8x128xf32> to vector<8x128xf32>
    %13 = arith.truncf %10 : vector<8x128xf32> to vector<8x128xbf16>
    %cst_14 = arith.constant dense<0.000000e+00> : vector<8x128xf32>
    %14 = tpu.matmul %13, %9, %cst_14 {dimension_numbers = #tpu.dot_dimension_numbers<[1], [0], [0], [1], [0, 0, 1, 1], [], []>} : vector<8x128xbf16>, vector<128x128xbf16>, vector<8x128xf32> -> vector<8x128xf32>
    %15 = arith.addf %12, %14 : vector<8x128xf32>
    %16 = math.tanh %15 : vector<8x128xf32>
    %c1 = arith.constant 1 : index
    %c0_15 = arith.constant 0 : index
    %c0_16 = arith.constant 0 : index
    %17 = vector.load %arg10[%c1, %c0_15, %c0_16] : memref<16x8x128xf32, #tpu.memory_space<vmem>>, vector<1x8x128xf32>
    %18 = vector.shape_cast %17 : vector<1x8x128xf32> to vector<8x128xf32>
    %19 = arith.truncf %16 : vector<8x128xf32> to vector<8x128xbf16>
    %cst_17 = arith.constant dense<0.000000e+00> : vector<8x128xf32>
    %20 = tpu.matmul %19, %9, %cst_17 {dimension_numbers = #tpu.dot_dimension_numbers<[1], [0], [0], [1], [0, 0, 1, 1], [], []>} : vector<8x128xbf16>, vector<128x128xbf16>, vector<8x128xf32> -> vector<8x128xf32>
    %21 = arith.addf %18, %20 : vector<8x128xf32>
    %22 = math.tanh %21 : vector<8x128xf32>
    %c2 = arith.constant 2 : index
    %c0_18 = arith.constant 0 : index
    %c0_19 = arith.constant 0 : index
    %23 = vector.load %arg10[%c2, %c0_18, %c0_19] : memref<16x8x128xf32, #tpu.memory_space<vmem>>, vector<1x8x128xf32>
    %24 = vector.shape_cast %23 : vector<1x8x128xf32> to vector<8x128xf32>
    %25 = arith.truncf %22 : vector<8x128xf32> to vector<8x128xbf16>
    %cst_20 = arith.constant dense<0.000000e+00> : vector<8x128xf32>
    %26 = tpu.matmul %25, %9, %cst_20 {dimension_numbers = #tpu.dot_dimension_numbers<[1], [0], [0], [1], [0, 0, 1, 1], [], []>} : vector<8x128xbf16>, vector<128x128xbf16>, vector<8x128xf32> -> vector<8x128xf32>
    %27 = arith.addf %24, %26 : vector<8x128xf32>
    %28 = math.tanh %27 : vector<8x128xf32>
    %c3 = arith.constant 3 : index
    %c0_21 = arith.constant 0 : index
    %c0_22 = arith.constant 0 : index
    %29 = vector.load %arg10[%c3, %c0_21, %c0_22] : memref<16x8x128xf32, #tpu.memory_space<vmem>>, vector<1x8x128xf32>
    %30 = vector.shape_cast %29 : vector<1x8x128xf32> to vector<8x128xf32>
    %31 = arith.truncf %28 : vector<8x128xf32> to vector<8x128xbf16>
    %cst_23 = arith.constant dense<0.000000e+00> : vector<8x128xf32>
    %32 = tpu.matmul %31, %9, %cst_23 {dimension_numbers = #tpu.dot_dimension_numbers<[1], [0], [0], [1], [0, 0, 1, 1], [], []>} : vector<8x128xbf16>, vector<128x128xbf16>, vector<8x128xf32> -> vector<8x128xf32>
    %33 = arith.addf %30, %32 : vector<8x128xf32>
    %34 = math.tanh %33 : vector<8x128xf32>
    %c4 = arith.constant 4 : index
    %c0_24 = arith.constant 0 : index
    %c0_25 = arith.constant 0 : index
    %35 = vector.load %arg10[%c4, %c0_24, %c0_25] : memref<16x8x128xf32, #tpu.memory_space<vmem>>, vector<1x8x128xf32>
    %36 = vector.shape_cast %35 : vector<1x8x128xf32> to vector<8x128xf32>
    %37 = arith.truncf %34 : vector<8x128xf32> to vector<8x128xbf16>
    %cst_26 = arith.constant dense<0.000000e+00> : vector<8x128xf32>
    %38 = tpu.matmul %37, %9, %cst_26 {dimension_numbers = #tpu.dot_dimension_numbers<[1], [0], [0], [1], [0, 0, 1, 1], [], []>} : vector<8x128xbf16>, vector<128x128xbf16>, vector<8x128xf32> -> vector<8x128xf32>
    %39 = arith.addf %36, %38 : vector<8x128xf32>
    %40 = math.tanh %39 : vector<8x128xf32>
    %c5 = arith.constant 5 : index
    %c0_27 = arith.constant 0 : index
    %c0_28 = arith.constant 0 : index
    %41 = vector.load %arg10[%c5, %c0_27, %c0_28] : memref<16x8x128xf32, #tpu.memory_space<vmem>>, vector<1x8x128xf32>
    %42 = vector.shape_cast %41 : vector<1x8x128xf32> to vector<8x128xf32>
    %43 = arith.truncf %40 : vector<8x128xf32> to vector<8x128xbf16>
    %cst_29 = arith.constant dense<0.000000e+00> : vector<8x128xf32>
    %44 = tpu.matmul %43, %9, %cst_29 {dimension_numbers = #tpu.dot_dimension_numbers<[1], [0], [0], [1], [0, 0, 1, 1], [], []>} : vector<8x128xbf16>, vector<128x128xbf16>, vector<8x128xf32> -> vector<8x128xf32>
    %45 = arith.addf %42, %44 : vector<8x128xf32>
    %46 = math.tanh %45 : vector<8x128xf32>
    %c6 = arith.constant 6 : index
    %c0_30 = arith.constant 0 : index
    %c0_31 = arith.constant 0 : index
    %47 = vector.load %arg10[%c6, %c0_30, %c0_31] : memref<16x8x128xf32, #tpu.memory_space<vmem>>, vector<1x8x128xf32>
    %48 = vector.shape_cast %47 : vector<1x8x128xf32> to vector<8x128xf32>
    %49 = arith.truncf %46 : vector<8x128xf32> to vector<8x128xbf16>
    %cst_32 = arith.constant dense<0.000000e+00> : vector<8x128xf32>
    %50 = tpu.matmul %49, %9, %cst_32 {dimension_numbers = #tpu.dot_dimension_numbers<[1], [0], [0], [1], [0, 0, 1, 1], [], []>} : vector<8x128xbf16>, vector<128x128xbf16>, vector<8x128xf32> -> vector<8x128xf32>
    %51 = arith.addf %48, %50 : vector<8x128xf32>
    %52 = math.tanh %51 : vector<8x128xf32>
    %c7 = arith.constant 7 : index
    %c0_33 = arith.constant 0 : index
    %c0_34 = arith.constant 0 : index
    %53 = vector.load %arg10[%c7, %c0_33, %c0_34] : memref<16x8x128xf32, #tpu.memory_space<vmem>>, vector<1x8x128xf32>
    %54 = vector.shape_cast %53 : vector<1x8x128xf32> to vector<8x128xf32>
    %55 = arith.truncf %52 : vector<8x128xf32> to vector<8x128xbf16>
    %cst_35 = arith.constant dense<0.000000e+00> : vector<8x128xf32>
    %56 = tpu.matmul %55, %9, %cst_35 {dimension_numbers = #tpu.dot_dimension_numbers<[1], [0], [0], [1], [0, 0, 1, 1], [], []>} : vector<8x128xbf16>, vector<128x128xbf16>, vector<8x128xf32> -> vector<8x128xf32>
    %57 = arith.addf %54, %56 : vector<8x128xf32>
    %58 = math.tanh %57 : vector<8x128xf32>
    %c0_36 = arith.constant 0 : index
    %c0_37 = arith.constant 0 : index
    %c0_38 = arith.constant 0 : index
    %59 = vector.load %arg11[%c0_36, %c0_37, %c0_38] : memref<2x8x128xf32, #tpu.memory_space<vmem>>, vector<1x8x128xf32>
    %60 = vector.shape_cast %59 : vector<1x8x128xf32> to vector<8x128xf32>
    %61 = vector.shape_cast %58 : vector<8x128xf32> to vector<1x8x128xf32>
    tpu.vector_store %arg11[%c0_36, %c0_37, %c0_38], %61 {strides = array<i32>} : memref<2x8x128xf32, #tpu.memory_space<vmem>>, vector<1x8x128xf32>,
    %c8 = arith.constant 8 : index
    %c0_39 = arith.constant 0 : index
    %c0_40 = arith.constant 0 : index
    %62 = vector.load %arg10[%c8, %c0_39, %c0_40] : memref<16x8x128xf32, #tpu.memory_space<vmem>>, vector<1x8x128xf32>
    %63 = vector.shape_cast %62 : vector<1x8x128xf32> to vector<8x128xf32>
    %64 = arith.truncf %58 : vector<8x128xf32> to vector<8x128xbf16>
    %cst_41 = arith.constant dense<0.000000e+00> : vector<8x128xf32>
    %65 = tpu.matmul %64, %9, %cst_41 {dimension_numbers = #tpu.dot_dimension_numbers<[1], [0], [0], [1], [0, 0, 1, 1], [], []>} : vector<8x128xbf16>, vector<128x128xbf16>, vector<8x128xf32> -> vector<8x128xf32>
    %66 = arith.addf %63, %65 : vector<8x128xf32>
    %67 = math.tanh %66 : vector<8x128xf32>
    %c9 = arith.constant 9 : index
    %c0_42 = arith.constant 0 : index
    %c0_43 = arith.constant 0 : index
    %68 = vector.load %arg10[%c9, %c0_42, %c0_43] : memref<16x8x128xf32, #tpu.memory_space<vmem>>, vector<1x8x128xf32>
    %69 = vector.shape_cast %68 : vector<1x8x128xf32> to vector<8x128xf32>
    %70 = arith.truncf %67 : vector<8x128xf32> to vector<8x128xbf16>
    %cst_44 = arith.constant dense<0.000000e+00> : vector<8x128xf32>
    %71 = tpu.matmul %70, %9, %cst_44 {dimension_numbers = #tpu.dot_dimension_numbers<[1], [0], [0], [1], [0, 0, 1, 1], [], []>} : vector<8x128xbf16>, vector<128x128xbf16>, vector<8x128xf32> -> vector<8x128xf32>
    %72 = arith.addf %69, %71 : vector<8x128xf32>
    %73 = math.tanh %72 : vector<8x128xf32>
    %c10 = arith.constant 10 : index
    %c0_45 = arith.constant 0 : index
    %c0_46 = arith.constant 0 : index
    %74 = vector.load %arg10[%c10, %c0_45, %c0_46] : memref<16x8x128xf32, #tpu.memory_space<vmem>>, vector<1x8x128xf32>
    %75 = vector.shape_cast %74 : vector<1x8x128xf32> to vector<8x128xf32>
    %76 = arith.truncf %73 : vector<8x128xf32> to vector<8x128xbf16>
    %cst_47 = arith.constant dense<0.000000e+00> : vector<8x128xf32>
    %77 = tpu.matmul %76, %9, %cst_47 {dimension_numbers = #tpu.dot_dimension_numbers<[1], [0], [0], [1], [0, 0, 1, 1], [], []>} : vector<8x128xbf16>, vector<128x128xbf16>, vector<8x128xf32> -> vector<8x128xf32>
    %78 = arith.addf %75, %77 : vector<8x128xf32>
    %79 = math.tanh %78 : vector<8x128xf32>
    %c11 = arith.constant 11 : index
    %c0_48 = arith.constant 0 : index
    %c0_49 = arith.constant 0 : index
    %80 = vector.load %arg10[%c11, %c0_48, %c0_49] : memref<16x8x128xf32, #tpu.memory_space<vmem>>, vector<1x8x128xf32>
    %81 = vector.shape_cast %80 : vector<1x8x128xf32> to vector<8x128xf32>
    %82 = arith.truncf %79 : vector<8x128xf32> to vector<8x128xbf16>
    %cst_50 = arith.constant dense<0.000000e+00> : vector<8x128xf32>
    %83 = tpu.matmul %82, %9, %cst_50 {dimension_numbers = #tpu.dot_dimension_numbers<[1], [0], [0], [1], [0, 0, 1, 1], [], []>} : vector<8x128xbf16>, vector<128x128xbf16>, vector<8x128xf32> -> vector<8x128xf32>
    %84 = arith.addf %81, %83 : vector<8x128xf32>
    %85 = math.tanh %84 : vector<8x128xf32>
    %c12 = arith.constant 12 : index
    %c0_51 = arith.constant 0 : index
    %c0_52 = arith.constant 0 : index
    %86 = vector.load %arg10[%c12, %c0_51, %c0_52] : memref<16x8x128xf32, #tpu.memory_space<vmem>>, vector<1x8x128xf32>
    %87 = vector.shape_cast %86 : vector<1x8x128xf32> to vector<8x128xf32>
    %88 = arith.truncf %85 : vector<8x128xf32> to vector<8x128xbf16>
    %cst_53 = arith.constant dense<0.000000e+00> : vector<8x128xf32>
    %89 = tpu.matmul %88, %9, %cst_53 {dimension_numbers = #tpu.dot_dimension_numbers<[1], [0], [0], [1], [0, 0, 1, 1], [], []>} : vector<8x128xbf16>, vector<128x128xbf16>, vector<8x128xf32> -> vector<8x128xf32>
    %90 = arith.addf %87, %89 : vector<8x128xf32>
    %91 = math.tanh %90 : vector<8x128xf32>
    %c13 = arith.constant 13 : index
    %c0_54 = arith.constant 0 : index
    %c0_55 = arith.constant 0 : index
    %92 = vector.load %arg10[%c13, %c0_54, %c0_55] : memref<16x8x128xf32, #tpu.memory_space<vmem>>, vector<1x8x128xf32>
    %93 = vector.shape_cast %92 : vector<1x8x128xf32> to vector<8x128xf32>
    %94 = arith.truncf %91 : vector<8x128xf32> to vector<8x128xbf16>
    %cst_56 = arith.constant dense<0.000000e+00> : vector<8x128xf32>
    %95 = tpu.matmul %94, %9, %cst_56 {dimension_numbers = #tpu.dot_dimension_numbers<[1], [0], [0], [1], [0, 0, 1, 1], [], []>} : vector<8x128xbf16>, vector<128x128xbf16>, vector<8x128xf32> -> vector<8x128xf32>
    %96 = arith.addf %93, %95 : vector<8x128xf32>
    %97 = math.tanh %96 : vector<8x128xf32>
    %c14 = arith.constant 14 : index
    %c0_57 = arith.constant 0 : index
    %c0_58 = arith.constant 0 : index
    %98 = vector.load %arg10[%c14, %c0_57, %c0_58] : memref<16x8x128xf32, #tpu.memory_space<vmem>>, vector<1x8x128xf32>
    %99 = vector.shape_cast %98 : vector<1x8x128xf32> to vector<8x128xf32>
    %100 = arith.truncf %97 : vector<8x128xf32> to vector<8x128xbf16>
    %cst_59 = arith.constant dense<0.000000e+00> : vector<8x128xf32>
    %101 = tpu.matmul %100, %9, %cst_59 {dimension_numbers = #tpu.dot_dimension_numbers<[1], [0], [0], [1], [0, 0, 1, 1], [], []>} : vector<8x128xbf16>, vector<128x128xbf16>, vector<8x128xf32> -> vector<8x128xf32>
    %102 = arith.addf %99, %101 : vector<8x128xf32>
    %103 = math.tanh %102 : vector<8x128xf32>
    %c15 = arith.constant 15 : index
    %c0_60 = arith.constant 0 : index
    %c0_61 = arith.constant 0 : index
    %104 = vector.load %arg10[%c15, %c0_60, %c0_61] : memref<16x8x128xf32, #tpu.memory_space<vmem>>, vector<1x8x128xf32>
    %105 = vector.shape_cast %104 : vector<1x8x128xf32> to vector<8x128xf32>
    %106 = arith.truncf %103 : vector<8x128xf32> to vector<8x128xbf16>
    %cst_62 = arith.constant dense<0.000000e+00> : vector<8x128xf32>
    %107 = tpu.matmul %106, %9, %cst_62 {dimension_numbers = #tpu.dot_dimension_numbers<[1], [0], [0], [1], [0, 0, 1, 1], [], []>} : vector<8x128xbf16>, vector<128x128xbf16>, vector<8x128xf32> -> vector<8x128xf32>
    %108 = arith.addf %105, %107 : vector<8x128xf32>
    %109 = math.tanh %108 : vector<8x128xf32>
    %c1_63 = arith.constant 1 : index
    %c0_64 = arith.constant 0 : index
    %c0_65 = arith.constant 0 : index
    %110 = vector.load %arg11[%c1_63, %c0_64, %c0_65] : memref<2x8x128xf32, #tpu.memory_space<vmem>>, vector<1x8x128xf32>
    %111 = vector.shape_cast %110 : vector<1x8x128xf32> to vector<8x128xf32>
    %112 = vector.shape_cast %109 : vector<8x128xf32> to vector<1x8x128xf32>
    tpu.vector_store %arg11[%c1_63, %c0_64, %c0_65], %112 {strides = array<i32>} : memref<2x8x128xf32, #tpu.memory_space<vmem>>, vector<1x8x128xf32>,
    %c0_66 = arith.constant 0 : index
    %c0_67 = arith.constant 0 : index
    %c0_68 = arith.constant 0 : index
    %113 = vector.load %arg11[%c0_66, %c0_67, %c0_68] : memref<2x8x128xf32, #tpu.memory_space<vmem>>, vector<2x8x128xf32>
    %114 = vector.shape_cast %113 : vector<2x8x128xf32> to vector<16x128xf32>
    %c0_69 = arith.constant 0 : index
    %c0_70 = arith.constant 0 : index
    %115 = vector.load %arg4[%c0_69, %c0_70] : memref<128x128xf32, #tpu.memory_space<vmem>>, vector<128x128xf32>
    %cst_71 = arith.constant dense<0.000000e+00> : vector<16x128xf32>
    %116 = tpu.matmul %114, %115, %cst_71 {dimension_numbers = #tpu.dot_dimension_numbers<[1], [0], [0], [1], [0, 0, 1, 1], [], []>} : vector<16x128xf32>, vector<128x128xf32>, vector<16x128xf32> -> vector<16x128xf32>
    %c0_72 = arith.constant 0 : index
    %c0_73 = arith.constant 0 : index
    %117 = vector.load %arg6[%c0_72, %c0_73] : memref<1x128xf32, #tpu.memory_space<vmem>>, vector<1x128xf32>
    %118 = vector.broadcast %117 : vector<1x128xf32> to vector<16x128xf32>
    %119 = arith.addf %116, %118 : vector<16x128xf32>
    %120 = vector.shape_cast %119 : vector<16x128xf32> to vector<2x8x128xf32>
    %c0_74 = arith.constant 0 : index
    %c0_75 = arith.constant 0 : index
    %c0_76 = arith.constant 0 : index
    %121 = vector.load %arg12[%c0_74, %c0_75, %c0_76] : memref<2x8x128xf32, #tpu.memory_space<vmem>>, vector<2x8x128xf32>
    tpu.vector_store %arg12[%c0_74, %c0_75, %c0_76], %120 {strides = array<i32>} : memref<2x8x128xf32, #tpu.memory_space<vmem>>, vector<2x8x128xf32>,
    %c0_77 = arith.constant 0 : index
    %c0_78 = arith.constant 0 : index
    %122 = vector.load %arg5[%c0_77, %c0_78] : memref<128x128xf32, #tpu.memory_space<vmem>>, vector<128x128xf32>
    %123 = arith.truncf %122 : vector<128x128xf32> to vector<128x128xbf16>
    %cst_79 = arith.constant 0.000000e+00 : f32
    %124 = vector.broadcast %cst_79 : f32 to vector<2x128xf32>
    %c0_80 = arith.constant 0 : index
    %c0_81 = arith.constant 0 : index
    %c0_82 = arith.constant 0 : index
    %125 = vector.load %arg12[%c0_80, %c0_81, %c0_82] : memref<2x8x128xf32, #tpu.memory_space<vmem>>, vector<2x1x128xf32>
    %126 = vector.shape_cast %125 : vector<2x1x128xf32> to vector<2x128xf32>
    %127 = arith.truncf %124 : vector<2x128xf32> to vector<2x128xbf16>
    %cst_83 = arith.constant dense<0.000000e+00> : vector<2x128xf32>
    %128 = tpu.matmul %127, %123, %cst_83 {dimension_numbers = #tpu.dot_dimension_numbers<[1], [0], [0], [1], [0, 0, 1, 1], [], []>} : vector<2x128xbf16>, vector<128x128xbf16>, vector<2x128xf32> -> vector<2x128xf32>
    %129 = arith.addf %126, %128 : vector<2x128xf32>
    %130 = math.tanh %129 : vector<2x128xf32>
    %c0_84 = arith.constant 0 : index
    %c1_85 = arith.constant 1 : index
    %c0_86 = arith.constant 0 : index
    %131 = vector.load %arg12[%c0_84, %c1_85, %c0_86] : memref<2x8x128xf32, #tpu.memory_space<vmem>>, vector<2x1x128xf32>
    %132 = vector.shape_cast %131 : vector<2x1x128xf32> to vector<2x128xf32>
    %133 = arith.truncf %130 : vector<2x128xf32> to vector<2x128xbf16>
    %cst_87 = arith.constant dense<0.000000e+00> : vector<2x128xf32>
    %134 = tpu.matmul %133, %123, %cst_87 {dimension_numbers = #tpu.dot_dimension_numbers<[1], [0], [0], [1], [0, 0, 1, 1], [], []>} : vector<2x128xbf16>, vector<128x128xbf16>, vector<2x128xf32> -> vector<2x128xf32>
    %135 = arith.addf %132, %134 : vector<2x128xf32>
    %136 = math.tanh %135 : vector<2x128xf32>
    %c0_88 = arith.constant 0 : index
    %c2_89 = arith.constant 2 : index
    %c0_90 = arith.constant 0 : index
    %137 = vector.load %arg12[%c0_88, %c2_89, %c0_90] : memref<2x8x128xf32, #tpu.memory_space<vmem>>, vector<2x1x128xf32>
    %138 = vector.shape_cast %137 : vector<2x1x128xf32> to vector<2x128xf32>
    %139 = arith.truncf %136 : vector<2x128xf32> to vector<2x128xbf16>
    %cst_91 = arith.constant dense<0.000000e+00> : vector<2x128xf32>
    %140 = tpu.matmul %139, %123, %cst_91 {dimension_numbers = #tpu.dot_dimension_numbers<[1], [0], [0], [1], [0, 0, 1, 1], [], []>} : vector<2x128xbf16>, vector<128x128xbf16>, vector<2x128xf32> -> vector<2x128xf32>
    %141 = arith.addf %138, %140 : vector<2x128xf32>
    %142 = math.tanh %141 : vector<2x128xf32>
    %c0_92 = arith.constant 0 : index
    %c3_93 = arith.constant 3 : index
    %c0_94 = arith.constant 0 : index
    %143 = vector.load %arg12[%c0_92, %c3_93, %c0_94] : memref<2x8x128xf32, #tpu.memory_space<vmem>>, vector<2x1x128xf32>
    %144 = vector.shape_cast %143 : vector<2x1x128xf32> to vector<2x128xf32>
    %145 = arith.truncf %142 : vector<2x128xf32> to vector<2x128xbf16>
    %cst_95 = arith.constant dense<0.000000e+00> : vector<2x128xf32>
    %146 = tpu.matmul %145, %123, %cst_95 {dimension_numbers = #tpu.dot_dimension_numbers<[1], [0], [0], [1], [0, 0, 1, 1], [], []>} : vector<2x128xbf16>, vector<128x128xbf16>, vector<2x128xf32> -> vector<2x128xf32>
    %147 = arith.addf %144, %146 : vector<2x128xf32>
    %148 = math.tanh %147 : vector<2x128xf32>
    %c0_96 = arith.constant 0 : index
    %c4_97 = arith.constant 4 : index
    %c0_98 = arith.constant 0 : index
    %149 = vector.load %arg12[%c0_96, %c4_97, %c0_98] : memref<2x8x128xf32, #tpu.memory_space<vmem>>, vector<2x1x128xf32>
    %150 = vector.shape_cast %149 : vector<2x1x128xf32> to vector<2x128xf32>
    %151 = arith.truncf %148 : vector<2x128xf32> to vector<2x128xbf16>
    %cst_99 = arith.constant dense<0.000000e+00> : vector<2x128xf32>
    %152 = tpu.matmul %151, %123, %cst_99 {dimension_numbers = #tpu.dot_dimension_numbers<[1], [0], [0], [1], [0, 0, 1, 1], [], []>} : vector<2x128xbf16>, vector<128x128xbf16>, vector<2x128xf32> -> vector<2x128xf32>
    %153 = arith.addf %150, %152 : vector<2x128xf32>
    %154 = math.tanh %153 : vector<2x128xf32>
    %c0_100 = arith.constant 0 : index
    %c0_101 = arith.constant 0 : index
    %155 = vector.load %arg7[%c0_100, %c0_101] : memref<128x16xf32, #tpu.memory_space<vmem>>, vector<128x16xf32>
    %cst_102 = arith.constant dense<0.000000e+00> : vector<2x16xf32>
    %156 = tpu.matmul %154, %155, %cst_102 {dimension_numbers = #tpu.dot_dimension_numbers<[1], [0], [0], [1], [0, 0, 1, 1], [], []>} : vector<2x128xf32>, vector<128x16xf32>, vector<2x16xf32> -> vector<2x16xf32>
    %c0_103 = arith.constant 0 : index
    %c0_104 = arith.constant 0 : index
    %157 = vector.load %arg8[%c0_103, %c0_104] : memref<1x16xf32, #tpu.memory_space<vmem>>, vector<1x16xf32>
    %158 = vector.broadcast %157 : vector<1x16xf32> to vector<2x16xf32>
    %159 = arith.addf %156, %158 : vector<2x16xf32>
    %c0_105 = arith.constant 0 : index
    %c0_106 = arith.constant 0 : index
    %160 = vector.load %arg9[%c0_105, %c0_106] : memref<2x16xf32, #tpu.memory_space<vmem>>, vector<2x16xf32>
    tpu.vector_store %arg9[%c0_105, %c0_106], %159 {strides = array<i32>} : memref<2x16xf32, #tpu.memory_space<vmem>>, vector<2x16xf32>,
    return
  }
}

</mosaic_0001>

<llo_original>
// kernel: tpu_custom_call.1
$region0: #{tpu_custom_call.1}
  #allocation0 [shape = 'u32[]', space=smem, size = 0x4, offset = 0x4, fixed_abs, tag = 'smem constant byte address 0x4 - core index']
  #allocation1 [shape = 'u32[144,128]{1,0:T(1,128)}', space=vmem, size = 0x12000, scoped, tag = 'internal scratch']
  #allocation2 [shape = 'f32[16,8,128]{2,1,0:T(8,128)}', space=vmem, size = 0x10000, scoped, tag = 'scratch operand']
  #allocation3 [shape = 'f32[2,8,128]{2,1,0:T(8,128)}', space=vmem, size = 0x2000, scoped, tag = 'scratch operand']
  #allocation4 [shape = 'f32[2,8,128]{2,1,0:T(8,128)}', space=vmem, size = 0x2000, scoped, tag = 'scratch operand']
  %s0 = inlined_call_operand.vmem [shape: f32[128,8], index: 0, kind: input, shape index: {}]
  %s1 = inlined_call_operand.vmem [shape: f32[8,128], index: 1, kind: input, shape index: {}]
  %s2 = inlined_call_operand.vmem [shape: f32[128,128], index: 2, kind: input, shape index: {}]
  %s3 = inlined_call_operand.vmem [shape: f32[1,128], index: 3, kind: input, shape index: {}]
  %s4 = inlined_call_operand.vmem [shape: f32[128,128], index: 4, kind: input, shape index: {}]
  %s5 = inlined_call_operand.hbm [shape: f32[128,128], index: 5, kind: input, shape index: {}]
  %s6 = inlined_call_operand.vmem [shape: f32[1,128], index: 6, kind: input, shape index: {}]
  %s7 = inlined_call_operand.vmem [shape: f32[128,16], index: 7, kind: input, shape index: {}]
  %s8 = inlined_call_operand.vmem [shape: f32[1,16], index: 8, kind: input, shape index: {}]
  %s9 = inlined_call_operand.hbm [shape: f32[2,16], index: 9, kind: output, shape index: {}]
  %s10 = sld [smem:[#allocation0]]
  $region50: #{tpu_custom_call.1} parent=0
    _
  %s12 = ssub.s32 1, %s10
  %s13 = scalar_select 0, %s12, %s10
  $region1: #{tpu_custom_call.1} parent=0
    #allocation5 [shape = 'u8[65536]{0}', space=vmem, size = 0x10000, scoped, tag = 'input window, operand 5, single buffered']
    #allocation6 [shape = 's32[1]{0}', space=sflag, size = 0x4, scoped, tag = 'scoped memory for tpu_custom_call.1']
    #allocation7 [shape = 's32[1]{0}', space=sflag, size = 0x4, scoped, tag = 'scoped memory for tpu_custom_call.1']
    #allocation8 [shape = 'u8[1024]{0}', space=vmem, size = 0x400, scoped, tag = 'output window, operand 0, single buffered']
    %14 = vsyncpa [#allocation6], 0
    %15 = vsyncpa [#allocation7], 0
    // Predicated region
    $region2: #{tpu_custom_call.1} parent=1 // pred_check
      _
    $region3: #{tpu_custom_call.1} parent=1 // pred_check_branch
      %17 = sbr.rel (0) target = $region5
    $region4: #{tpu_custom_call.1} parent=1 // pred_region
      _
    $region5: #{tpu_custom_call.1} parent=1 // pred_fallthru
      _
    // Predicated region
    $region6: #{tpu_custom_call.1} parent=1 // pred_check
      _
    $region7: #{tpu_custom_call.1} parent=1 // pred_check_branch
      %19 = sbr.rel (0) target = $region9
    $region8: #{tpu_custom_call.1} parent=1 // pred_region
      _
    $region9: #{tpu_custom_call.1} parent=1 // pred_fallthru
      _
    // Predicated region
    $region10: #{tpu_custom_call.1} parent=1 // pred_check
      _
    $region11: #{tpu_custom_call.1} parent=1 // pred_check_branch
      %21 = sbr.rel (0) target = $region13
    $region12: #{tpu_custom_call.1} parent=1 // pred_region
      _
    $region13: #{tpu_custom_call.1} parent=1 // pred_fallthru
      _
    // Predicated region
    $region14: #{tpu_custom_call.1} parent=1 // pred_check
      _
    $region15: #{tpu_custom_call.1} parent=1 // pred_check_branch
      %23 = sbr.rel (0) target = $region17
    $region16: #{tpu_custom_call.1} parent=1 // pred_region
      _
    $region17: #{tpu_custom_call.1} parent=1 // pred_fallthru
      _
    // Predicated region
    $region18: #{tpu_custom_call.1} parent=1 // pred_check
      _
    $region19: #{tpu_custom_call.1} parent=1 // pred_check_branch
      %25 = sbr.rel (0) target = $region21
    $region20: #{tpu_custom_call.1} parent=1 // pred_region
      _
    $region21: #{tpu_custom_call.1} parent=1 // pred_fallthru
      _
    // Predicated region
    $region22: #{tpu_custom_call.1} parent=1 // pred_check
      _
    $region23: #{tpu_custom_call.1} parent=1 // pred_check_branch
      %27 = sbr.rel (0) target = $region25
    $region24: #{tpu_custom_call.1} parent=1 // pred_region
      %s29 = ssub.s32 2048, 2048
      %30 = vsyncadd [#allocation6], %s29
      %s31 = sshll.u32 [#allocation5], 4
      %s32 = int_to_ptr.vmem [resolvable:$true] %s31
      %37 = dma.hbm_to_vmem [thread:$0]  %s5, 2048, %s32, [#allocation6], 128, 128, 8
    $region25: #{tpu_custom_call.1} parent=1 // pred_fallthru
      _
    // Predicated region
    $region26: #{tpu_custom_call.1} parent=1 // pred_check
      _
    $region27: #{tpu_custom_call.1} parent=1 // pred_check_branch
      %39 = sbr.rel (0) target = $region29
    $region28: #{tpu_custom_call.1} parent=1 // pred_region
      _
    $region29: #{tpu_custom_call.1} parent=1 // pred_fallthru
      _
    // Predicated region
    $region30: #{tpu_custom_call.1} parent=1 // pred_check
      _
    $region31: #{tpu_custom_call.1} parent=1 // pred_check_branch
      %41 = sbr.rel (0) target = $region33
    $region32: #{tpu_custom_call.1} parent=1 // pred_region
      _
    $region33: #{tpu_custom_call.1} parent=1 // pred_fallthru
      _
    // Predicated region
    $region34: #{tpu_custom_call.1} parent=1 // pred_check
      _
    $region35: #{tpu_custom_call.1} parent=1 // pred_check_branch
      %43 = sbr.rel (0) target = $region37
    $region36: #{tpu_custom_call.1} parent=1 // pred_region
      _
    $region37: #{tpu_custom_call.1} parent=1 // pred_fallthru
      _
    // Predicated region
    $region38: #{tpu_custom_call.1} parent=1 // pred_check
      _
    $region39: #{tpu_custom_call.1} parent=1 // pred_check_branch
      %45 = sbr.rel (0) target = $region41
    $region40: #{tpu_custom_call.1} parent=1 // pred_region
      %46 = dma.done [#allocation6], 2048
    $region41: #{tpu_custom_call.1} parent=1 // pred_fallthru
      _
    %v48 = vld [vmem:[%s0] sm:$0xff]
    %v49 = vld [vmem:[%s0 + $0x8] sm:$0xff]
    %v50 = vld [vmem:[%s0 + $0x10] sm:$0xff]
    %v51 = vld [vmem:[%s0 + $0x18] sm:$0xff]
    %v52 = vld [vmem:[%s0 + $0x20] sm:$0xff]
    %v53 = vld [vmem:[%s0 + $0x28] sm:$0xff]
    %v54 = vld [vmem:[%s0 + $0x30] sm:$0xff]
    %v55 = vld [vmem:[%s0 + $0x38] sm:$0xff]
    %v56 = vld [vmem:[%s0 + $0x40] sm:$0xff]
    %v57 = vld [vmem:[%s0 + $0x48] sm:$0xff]
    %v58 = vld [vmem:[%s0 + $0x50] sm:$0xff]
    %v59 = vld [vmem:[%s0 + $0x58] sm:$0xff]
    %v60 = vld [vmem:[%s0 + $0x60] sm:$0xff]
    %v61 = vld [vmem:[%s0 + $0x68] sm:$0xff]
    %v62 = vld [vmem:[%s0 + $0x70] sm:$0xff]
    %v63 = vld [vmem:[%s0 + $0x78] sm:$0xff]
    %v64 = vld [vmem:[%s1] sm:$0xff]
    %v65 = vld [vmem:[%s3] sm:$0x1]
    %v67 = vlaneseq
    %v68 = vshrl.u32 %v67, 7
    %v69 = vsub.s32 0, %v68
    %v70 = vrot.slane %v65, %v69
    %vm72 = vcmask 64512
    %v74 = vsel %vm72, %v48, 0
    %v77 = vsel %vm72, %v49, 0
    %v80 = vsel %vm72, %v50, 0
    %v83 = vsel %vm72, %v51, 0
    %v86 = vsel %vm72, %v52, 0
    %v89 = vsel %vm72, %v53, 0
    %v92 = vsel %vm72, %v54, 0
    %v95 = vsel %vm72, %v55, 0
    %v98 = vsel %vm72, %v56, 0
    %v101 = vsel %vm72, %v57, 0
    %v104 = vsel %vm72, %v58, 0
    %v107 = vsel %vm72, %v59, 0
    %v110 = vsel %vm72, %v60, 0
    %v113 = vsel %vm72, %v61, 0
    %v116 = vsel %vm72, %v62, 0
    %v119 = vsel %vm72, %v63, 0
    %121 = vmatprep.subr.mxu0 0.0
    %122 = vmatpush1.msra.mxu0 0.0
    %123 = vmatprep.subr.mxu0 0.0
    %124 = vmatpush1.msra.mxu0 0.0
    %125 = vmatprep.subr.mxu0 0.0
    %126 = vmatpush1.msra.mxu0 0.0
    %127 = vmatprep.subr.mxu0 0.0
    %128 = vmatpush1.msra.mxu0 0.0
    %129 = vmatprep.subr.mxu0 0.0
    %130 = vmatpush1.msra.mxu0 0.0
    %131 = vmatprep.subr.mxu0 0.0
    %132 = vmatpush1.msra.mxu0 0.0
    %133 = vmatprep.subr.mxu0 0.0
    %134 = vmatpush1.msra.mxu0 0.0
    %135 = vmatprep.subr.mxu0 0.0
    %136 = vmatpush1.msra.mxu0 0.0
    %137 = vmatprep.subr.mxu0 0.0
    %138 = vmatpush1.msra.mxu0 0.0
    %139 = vmatprep.subr.mxu0 0.0
    %140 = vmatpush1.msra.mxu0 0.0
    %141 = vmatprep.subr.mxu0 0.0
    %142 = vmatpush1.msra.mxu0 0.0
    %143 = vmatprep.subr.mxu0 0.0
    %144 = vmatpush1.msra.mxu0 0.0
    %145 = vmatprep.subr.mxu0 0.0
    %146 = vmatpush1.msra.mxu0 0.0
    %147 = vmatprep.subr.mxu0 0.0
    %148 = vmatpush1.msra.mxu0 0.0
    %149 = vmatprep.subr.mxu0 0.0
    %150 = vmatpush1.msra.mxu0 0.0
    %151 = vmatprep.subr.mxu0 0.0
    %152 = vmatpush1.msra.mxu0 %v64
    %153 = vmatprep.subr.mxu0 0.0
    %154 = vmatpush2.msra.mxu0 0.0
    %155 = vmatprep.subr.mxu0 0.0
    %156 = vmatpush2.msra.mxu0 0.0
    %157 = vmatprep.subr.mxu0 0.0
    %158 = vmatpush2.msra.mxu0 0.0
    %159 = vmatprep.subr.mxu0 0.0
    %160 = vmatpush2.msra.mxu0 0.0
    %161 = vmatprep.subr.mxu0 0.0
    %162 = vmatpush2.msra.mxu0 0.0
    %163 = vmatprep.subr.mxu0 0.0
    %164 = vmatpush2.msra.mxu0 0.0
    %165 = vmatprep.subr.mxu0 0.0
    %166 = vmatpush2.msra.mxu0 0.0
    %167 = vmatprep.subr.mxu0 0.0
    %168 = vmatpush2.msra.mxu0 0.0
    %169 = vmatprep.subr.mxu0 0.0
    %170 = vmatpush2.msra.mxu0 0.0
    %171 = vmatprep.subr.mxu0 0.0
    %172 = vmatpush2.msra.mxu0 0.0
    %173 = vmatprep.subr.mxu0 0.0
    %174 = vmatpush2.msra.mxu0 0.0
    %175 = vmatprep.subr.mxu0 0.0
    %176 = vmatpush2.msra.mxu0 0.0
    %177 = vmatprep.subr.mxu0 0.0
    %178 = vmatpush2.msra.mxu0 0.0
    %179 = vmatprep.subr.mxu0 0.0
    %180 = vmatpush2.msra.mxu0 0.0
    %181 = vmatprep.subr.mxu0 0.0
    %182 = vmatpush2.msra.mxu0 0.0
    %183 = vmatprep.subr.mxu0 0.0
    %184 = vmatpush2.msra.mxu0 0.0
    %185 = vmatprep.mubr.f32.mxu0 0.0
    %186 = vmatmul.mubr.f32.gmra.mxu0 %v74
    %v187 = vpop.f32.mrf.mxu0
    %v188 = vadd.f32 %v70, %v187
    %v189 = vpop.f32.mrf.mxu0
    %190 = vmatprep.mubr.f32.mxu0 0.0
    %191 = vmatmul.mubr.f32.gmra.mxu0 %v77
    %v192 = vpop.f32.mrf.mxu0
    %v193 = vadd.f32 %v70, %v192
    %v194 = vpop.f32.mrf.mxu0
    %195 = vmatprep.mubr.f32.mxu0 0.0
    %196 = vmatmul.mubr.f32.gmra.mxu0 %v80
    %v197 = vpop.f32.mrf.mxu0
    %v198 = vadd.f32 %v70, %v197
    %v199 = vpop.f32.mrf.mxu0
    %200 = vmatprep.mubr.f32.mxu0 0.0
    %201 = vmatmul.mubr.f32.gmra.mxu0 %v83
    %v202 = vpop.f32.mrf.mxu0
    %v203 = vadd.f32 %v70, %v202
    %v204 = vpop.f32.mrf.mxu0
    %205 = vmatprep.mubr.f32.mxu0 0.0
    %206 = vmatmul.mubr.f32.gmra.mxu0 %v86
    %v207 = vpop.f32.mrf.mxu0
    %v208 = vadd.f32 %v70, %v207
    %v209 = vpop.f32.mrf.mxu0
    %210 = vmatprep.mubr.f32.mxu0 0.0
    %211 = vmatmul.mubr.f32.gmra.mxu0 %v89
    %v212 = vpop.f32.mrf.mxu0
    %v213 = vadd.f32 %v70, %v212
    %v214 = vpop.f32.mrf.mxu0
    %215 = vmatprep.mubr.f32.mxu0 0.0
    %216 = vmatmul.mubr.f32.gmra.mxu0 %v92
    %v217 = vpop.f32.mrf.mxu0
    %v218 = vadd.f32 %v70, %v217
    %v219 = vpop.f32.mrf.mxu0
    %220 = vmatprep.mubr.f32.mxu0 0.0
    %221 = vmatmul.mubr.f32.gmra.mxu0 %v95
    %v222 = vpop.f32.mrf.mxu0
    %v223 = vadd.f32 %v70, %v222
    %v224 = vpop.f32.mrf.mxu0
    %225 = vmatprep.mubr.f32.mxu0 0.0
    %226 = vmatmul.mubr.f32.gmra.mxu0 %v98
    %v227 = vpop.f32.mrf.mxu0
    %v228 = vadd.f32 %v70, %v227
    %v229 = vpop.f32.mrf.mxu0
    %230 = vmatprep.mubr.f32.mxu0 0.0
    %231 = vmatmul.mubr.f32.gmra.mxu0 %v101
    %v232 = vpop.f32.mrf.mxu0
    %v233 = vadd.f32 %v70, %v232
    %v234 = vpop.f32.mrf.mxu0
    %235 = vmatprep.mubr.f32.mxu0 0.0
    %236 = vmatmul.mubr.f32.gmra.mxu0 %v104
    %v237 = vpop.f32.mrf.mxu0
    %v238 = vadd.f32 %v70, %v237
    %v239 = vpop.f32.mrf.mxu0
    %240 = vmatprep.mubr.f32.mxu0 0.0
    %241 = vmatmul.mubr.f32.gmra.mxu0 %v107
    %v242 = vpop.f32.mrf.mxu0
    %v243 = vadd.f32 %v70, %v242
    %v244 = vpop.f32.mrf.mxu0
    %245 = vmatprep.mubr.f32.mxu0 0.0
    %246 = vmatmul.mubr.f32.gmra.mxu0 %v110
    %v247 = vpop.f32.mrf.mxu0
    %v248 = vadd.f32 %v70, %v247
    %v249 = vpop.f32.mrf.mxu0
    %250 = vmatprep.mubr.f32.mxu0 0.0
    %251 = vmatmul.mubr.f32.gmra.mxu0 %v113
    %v252 = vpop.f32.mrf.mxu0
    %v253 = vadd.f32 %v70, %v252
    %v254 = vpop.f32.mrf.mxu0
    %255 = vmatprep.mubr.f32.mxu0 0.0
    %256 = vmatmul.mubr.f32.gmra.mxu0 %v116
    %v257 = vpop.f32.mrf.mxu0
    %v258 = vadd.f32 %v70, %v257
    %v259 = vpop.f32.mrf.mxu0
    %260 = vmatprep.mubr.f32.mxu0 0.0
    %261 = vmatmul.mubr.f32.gmra.mxu0 %v119
    %v262 = vpop.f32.mrf.mxu0
    %v263 = vadd.f32 %v70, %v262
    %v264 = vpop.f32.mrf.mxu0
    %265 = vdwg.mxu0
    %266 = vst [vmem:[#allocation2] sm:$0xff] %v188
    %267 = vst [vmem:[#allocation2 + $0x8] sm:$0xff] %v193
    %268 = vst [vmem:[#allocation2 + $0x10] sm:$0xff] %v198
    %269 = vst [vmem:[#allocation2 + $0x18] sm:$0xff] %v203
    %270 = vst [vmem:[#allocation2 + $0x20] sm:$0xff] %v208
    %271 = vst [vmem:[#allocation2 + $0x28] sm:$0xff] %v213
    %272 = vst [vmem:[#allocation2 + $0x30] sm:$0xff] %v218
    %273 = vst [vmem:[#allocation2 + $0x38] sm:$0xff] %v223
    %274 = vst [vmem:[#allocation2 + $0x40] sm:$0xff] %v228
    %275 = vst [vmem:[#allocation2 + $0x48] sm:$0xff] %v233
    %276 = vst [vmem:[#allocation2 + $0x50] sm:$0xff] %v238
    %277 = vst [vmem:[#allocation2 + $0x58] sm:$0xff] %v243
    %278 = vst [vmem:[#allocation2 + $0x60] sm:$0xff] %v248
    %279 = vst [vmem:[#allocation2 + $0x68] sm:$0xff] %v253
    %280 = vst [vmem:[#allocation2 + $0x70] sm:$0xff] %v258
    %281 = vst [vmem:[#allocation2 + $0x78] sm:$0xff] %v263
    %v282 = vld [vmem:[%s2] sm:$0xff]
    %v283 = vld [vmem:[%s2 + $0x8] sm:$0xff]
    %v284 = vld [vmem:[%s2 + $0x10] sm:$0xff]
    %v285 = vld [vmem:[%s2 + $0x18] sm:$0xff]
    %v286 = vld [vmem:[%s2 + $0x20] sm:$0xff]
    %v287 = vld [vmem:[%s2 + $0x28] sm:$0xff]
    %v288 = vld [vmem:[%s2 + $0x30] sm:$0xff]
    %v289 = vld [vmem:[%s2 + $0x38] sm:$0xff]
    %v290 = vld [vmem:[%s2 + $0x40] sm:$0xff]
    %v291 = vld [vmem:[%s2 + $0x48] sm:$0xff]
    %v292 = vld [vmem:[%s2 + $0x50] sm:$0xff]
    %v293 = vld [vmem:[%s2 + $0x58] sm:$0xff]
    %v294 = vld [vmem:[%s2 + $0x60] sm:$0xff]
    %v295 = vld [vmem:[%s2 + $0x68] sm:$0xff]
    %v296 = vld [vmem:[%s2 + $0x70] sm:$0xff]
    %v297 = vld [vmem:[%s2 + $0x78] sm:$0xff]
    %v298 = vpack.c.bf16 %v283, %v282
    %v299 = vpack.c.bf16 %v285, %v284
    %v300 = vpack.c.bf16 %v287, %v286
    %v301 = vpack.c.bf16 %v289, %v288
    %v302 = vpack.c.bf16 %v291, %v290
    %v303 = vpack.c.bf16 %v293, %v292
    %v304 = vpack.c.bf16 %v295, %v294
    %v305 = vpack.c.bf16 %v297, %v296
    %v306 = vld [vmem:[#allocation2] sm:$0xff]
    %307 = vmatprep.subr.bf16.mxu0 0
    %308 = vmatpush1.bf16.msra.mxu0 %v305
    %309 = vmatprep.subr.bf16.mxu0 0
    %310 = vmatpush1.bf16.msra.mxu0 %v304
    %311 = vmatprep.subr.bf16.mxu0 0
    %312 = vmatpush1.bf16.msra.mxu0 %v303
    %313 = vmatprep.subr.bf16.mxu0 0
    %314 = vmatpush1.bf16.msra.mxu0 %v302
    %315 = vmatprep.subr.bf16.mxu0 0
    %316 = vmatpush1.bf16.msra.mxu0 %v301
    %317 = vmatprep.subr.bf16.mxu0 0
    %318 = vmatpush1.bf16.msra.mxu0 %v300
    %319 = vmatprep.subr.bf16.mxu0 0
    %320 = vmatpush1.bf16.msra.mxu0 %v299
    %321 = vmatprep.subr.bf16.mxu0 0
    %322 = vmatpush1.bf16.msra.mxu0 %v298
    %323 = vmatprep.subr.bf16.mxu0 0
    %324 = vmatpush2.bf16.msra.mxu0 0
    %325 = vmatprep.subr.bf16.mxu0 0
    %326 = vmatpush2.bf16.msra.mxu0 0
    %327 = vmatprep.subr.bf16.mxu0 0
    %328 = vmatpush2.bf16.msra.mxu0 0
    %329 = vmatprep.subr.bf16.mxu0 0
    %330 = vmatpush2.bf16.msra.mxu0 0
    %331 = vmatprep.subr.bf16.mxu0 0
    %332 = vmatpush2.bf16.msra.mxu0 0
    %333 = vmatprep.subr.bf16.mxu0 0
    %334 = vmatpush2.bf16.msra.mxu0 0
    %335 = vmatprep.subr.bf16.mxu0 0
    %336 = vmatpush2.bf16.msra.mxu0 0
    %337 = vmatprep.subr.bf16.mxu0 0
    %338 = vmatpush2.bf16.msra.mxu0 0
    %339 = vmatprep.mubr.bf16.mxu0 0
    %340 = vmatmul.mubr.bf16.gmra.mxu0 0
    %v341 = vpop.f32.mrf.mxu0
    %v342 = vadd.f32 0.0, %v341
    %v343 = vpop.f32.mrf.mxu0
    %v344 = vpop.f32.mrf.mxu0
    %v345 = vpop.f32.mrf.mxu0
    %346 = vdwg.mxu0
    %v347 = vadd.f32 %v306, %v342
    %v348 = vtanh.pop %v347
    %s349 = scalar_lea.vmem [#allocation2], 8
    %v350 = vld [vmem:[%s349] sm:$0xff]
    %v351 = vpack.c.bf16 %v348, %v348
    %352 = vmatprep.subr.bf16.mxu0 0
    %353 = vmatpush1.bf16.msra.mxu0 %v305
    %354 = vmatprep.subr.bf16.mxu0 0
    %355 = vmatpush1.bf16.msra.mxu0 %v304
    %356 = vmatprep.subr.bf16.mxu0 0
    %357 = vmatpush1.bf16.msra.mxu0 %v303
    %358 = vmatprep.subr.bf16.mxu0 0
    %359 = vmatpush1.bf16.msra.mxu0 %v302
    %360 = vmatprep.subr.bf16.mxu0 0
    %361 = vmatpush1.bf16.msra.mxu0 %v301
    %362 = vmatprep.subr.bf16.mxu0 0
    %363 = vmatpush1.bf16.msra.mxu0 %v300
    %364 = vmatprep.subr.bf16.mxu0 0
    %365 = vmatpush1.bf16.msra.mxu0 %v299
    %366 = vmatprep.subr.bf16.mxu0 0
    %367 = vmatpush1.bf16.msra.mxu0 %v298
    %368 = vmatprep.subr.bf16.mxu0 0
    %369 = vmatpush2.bf16.msra.mxu0 0
    %370 = vmatprep.subr.bf16.mxu0 0
    %371 = vmatpush2.bf16.msra.mxu0 0
    %372 = vmatprep.subr.bf16.mxu0 0
    %373 = vmatpush2.bf16.msra.mxu0 0
    %374 = vmatprep.subr.bf16.mxu0 0
    %375 = vmatpush2.bf16.msra.mxu0 0
    %376 = vmatprep.subr.bf16.mxu0 0
    %377 = vmatpush2.bf16.msra.mxu0 0
    %378 = vmatprep.subr.bf16.mxu0 0
    %379 = vmatpush2.bf16.msra.mxu0 0
    %380 = vmatprep.subr.bf16.mxu0 0
    %381 = vmatpush2.bf16.msra.mxu0 0
    %382 = vmatprep.subr.bf16.mxu0 0
    %383 = vmatpush2.bf16.msra.mxu0 0
    %384 = vmatprep.mubr.bf16.mxu0 0
    %385 = vmatmul.mubr.bf16.gmra.mxu0 %v351
    %v386 = vpop.f32.mrf.mxu0
    %v387 = vadd.f32 0.0, %v386
    %v388 = vpop.f32.mrf.mxu0
    %v389 = vpop.f32.mrf.mxu0
    %v390 = vpop.f32.mrf.mxu0
    %391 = vdwg.mxu0
    %v392 = vadd.f32 %v350, %v387
    %v393 = vtanh.pop %v392
    %s394 = scalar_lea.vmem [#allocation2], 16
    %v395 = vld [vmem:[%s394] sm:$0xff]
    %v396 = vpack.c.bf16 %v393, %v393
    %397 = vmatprep.subr.bf16.mxu0 0
    %398 = vmatpush1.bf16.msra.mxu0 %v305
    %399 = vmatprep.subr.bf16.mxu0 0
    %400 = vmatpush1.bf16.msra.mxu0 %v304
    %401 = vmatprep.subr.bf16.mxu0 0
    %402 = vmatpush1.bf16.msra.mxu0 %v303
    %403 = vmatprep.subr.bf16.mxu0 0
    %404 = vmatpush1.bf16.msra.mxu0 %v302
    %405 = vmatprep.subr.bf16.mxu0 0
    %406 = vmatpush1.bf16.msra.mxu0 %v301
    %407 = vmatprep.subr.bf16.mxu0 0
    %408 = vmatpush1.bf16.msra.mxu0 %v300
    %409 = vmatprep.subr.bf16.mxu0 0
    %410 = vmatpush1.bf16.msra.mxu0 %v299
    %411 = vmatprep.subr.bf16.mxu0 0
    %412 = vmatpush1.bf16.msra.mxu0 %v298
    %413 = vmatprep.subr.bf16.mxu0 0
    %414 = vmatpush2.bf16.msra.mxu0 0
    %415 = vmatprep.subr.bf16.mxu0 0
    %416 = vmatpush2.bf16.msra.mxu0 0
    %417 = vmatprep.subr.bf16.mxu0 0
    %418 = vmatpush2.bf16.msra.mxu0 0
    %419 = vmatprep.subr.bf16.mxu0 0
    %420 = vmatpush2.bf16.msra.mxu0 0
    %421 = vmatprep.subr.bf16.mxu0 0
    %422 = vmatpush2.bf16.msra.mxu0 0
    %423 = vmatprep.subr.bf16.mxu0 0
    %424 = vmatpush2.bf16.msra.mxu0 0
    %425 = vmatprep.subr.bf16.mxu0 0
    %426 = vmatpush2.bf16.msra.mxu0 0
    %427 = vmatprep.subr.bf16.mxu0 0
    %428 = vmatpush2.bf16.msra.mxu0 0
    %429 = vmatprep.mubr.bf16.mxu0 0
    %430 = vmatmul.mubr.bf16.gmra.mxu0 %v396
    %v431 = vpop.f32.mrf.mxu0
    %v432 = vadd.f32 0.0, %v431
    %v433 = vpop.f32.mrf.mxu0
    %v434 = vpop.f32.mrf.mxu0
    %v435 = vpop.f32.mrf.mxu0
    %436 = vdwg.mxu0
    %v437 = vadd.f32 %v395, %v432
    %v438 = vtanh.pop %v437
    %s439 = scalar_lea.vmem [#allocation2], 24
    %v440 = vld [vmem:[%s439] sm:$0xff]
    %v441 = vpack.c.bf16 %v438, %v438
    %442 = vmatprep.subr.bf16.mxu0 0
    %443 = vmatpush1.bf16.msra.mxu0 %v305
    %444 = vmatprep.subr.bf16.mxu0 0
    %445 = vmatpush1.bf16.msra.mxu0 %v304
    %446 = vmatprep.subr.bf16.mxu0 0
    %447 = vmatpush1.bf16.msra.mxu0 %v303
    %448 = vmatprep.subr.bf16.mxu0 0
    %449 = vmatpush1.bf16.msra.mxu0 %v302
    %450 = vmatprep.subr.bf16.mxu0 0
    %451 = vmatpush1.bf16.msra.mxu0 %v301
    %452 = vmatprep.subr.bf16.mxu0 0
    %453 = vmatpush1.bf16.msra.mxu0 %v300
    %454 = vmatprep.subr.bf16.mxu0 0
    %455 = vmatpush1.bf16.msra.mxu0 %v299
    %456 = vmatprep.subr.bf16.mxu0 0
    %457 = vmatpush1.bf16.msra.mxu0 %v298
    %458 = vmatprep.subr.bf16.mxu0 0
    %459 = vmatpush2.bf16.msra.mxu0 0
    %460 = vmatprep.subr.bf16.mxu0 0
    %461 = vmatpush2.bf16.msra.mxu0 0
    %462 = vmatprep.subr.bf16.mxu0 0
    %463 = vmatpush2.bf16.msra.mxu0 0
    %464 = vmatprep.subr.bf16.mxu0 0
    %465 = vmatpush2.bf16.msra.mxu0 0
    %466 = vmatprep.subr.bf16.mxu0 0
    %467 = vmatpush2.bf16.msra.mxu0 0
    %468 = vmatprep.subr.bf16.mxu0 0
    %469 = vmatpush2.bf16.msra.mxu0 0
    %470 = vmatprep.subr.bf16.mxu0 0
    %471 = vmatpush2.bf16.msra.mxu0 0
    %472 = vmatprep.subr.bf16.mxu0 0
    %473 = vmatpush2.bf16.msra.mxu0 0
    %474 = vmatprep.mubr.bf16.mxu0 0
    %475 = vmatmul.mubr.bf16.gmra.mxu0 %v441
    %v476 = vpop.f32.mrf.mxu0
    %v477 = vadd.f32 0.0, %v476
    %v478 = vpop.f32.mrf.mxu0
    %v479 = vpop.f32.mrf.mxu0
    %v480 = vpop.f32.mrf.mxu0
    %481 = vdwg.mxu0
    %v482 = vadd.f32 %v440, %v477
    %v483 = vtanh.pop %v482
    %s484 = scalar_lea.vmem [#allocation2], 32
    %v485 = vld [vmem:[%s484] sm:$0xff]
    %v486 = vpack.c.bf16 %v483, %v483
    %487 = vmatprep.subr.bf16.mxu0 0
    %488 = vmatpush1.bf16.msra.mxu0 %v305
    %489 = vmatprep.subr.bf16.mxu0 0
    %490 = vmatpush1.bf16.msra.mxu0 %v304
    %491 = vmatprep.subr.bf16.mxu0 0
    %492 = vmatpush1.bf16.msra.mxu0 %v303
    %493 = vmatprep.subr.bf16.mxu0 0
    %494 = vmatpush1.bf16.msra.mxu0 %v302
    %495 = vmatprep.subr.bf16.mxu0 0
    %496 = vmatpush1.bf16.msra.mxu0 %v301
    %497 = vmatprep.subr.bf16.mxu0 0
    %498 = vmatpush1.bf16.msra.mxu0 %v300
    %499 = vmatprep.subr.bf16.mxu0 0
    %500 = vmatpush1.bf16.msra.mxu0 %v299
    %501 = vmatprep.subr.bf16.mxu0 0
    %502 = vmatpush1.bf16.msra.mxu0 %v298
    %503 = vmatprep.subr.bf16.mxu0 0
    %504 = vmatpush2.bf16.msra.mxu0 0
    %505 = vmatprep.subr.bf16.mxu0 0
    %506 = vmatpush2.bf16.msra.mxu0 0
    %507 = vmatprep.subr.bf16.mxu0 0
    %508 = vmatpush2.bf16.msra.mxu0 0
    %509 = vmatprep.subr.bf16.mxu0 0
    %510 = vmatpush2.bf16.msra.mxu0 0
    %511 = vmatprep.subr.bf16.mxu0 0
    %512 = vmatpush2.bf16.msra.mxu0 0
    %513 = vmatprep.subr.bf16.mxu0 0
    %514 = vmatpush2.bf16.msra.mxu0 0
    %515 = vmatprep.subr.bf16.mxu0 0
    %516 = vmatpush2.bf16.msra.mxu0 0
    %517 = vmatprep.subr.bf16.mxu0 0
    %518 = vmatpush2.bf16.msra.mxu0 0
    %519 = vmatprep.mubr.bf16.mxu0 0
    %520 = vmatmul.mubr.bf16.gmra.mxu0 %v486
    %v521 = vpop.f32.mrf.mxu0
    %v522 = vadd.f32 0.0, %v521
    %v523 = vpop.f32.mrf.mxu0
    %v524 = vpop.f32.mrf.mxu0
    %v525 = vpop.f32.mrf.mxu0
    %526 = vdwg.mxu0
    %v527 = vadd.f32 %v485, %v522
    %v528 = vtanh.pop %v527
    %s529 = scalar_lea.vmem [#allocation2], 40
    %v530 = vld [vmem:[%s529] sm:$0xff]
    %v531 = vpack.c.bf16 %v528, %v528
    %532 = vmatprep.subr.bf16.mxu0 0
    %533 = vmatpush1.bf16.msra.mxu0 %v305
    %534 = vmatprep.subr.bf16.mxu0 0
    %535 = vmatpush1.bf16.msra.mxu0 %v304
    %536 = vmatprep.subr.bf16.mxu0 0
    %537 = vmatpush1.bf16.msra.mxu0 %v303
    %538 = vmatprep.subr.bf16.mxu0 0
    %539 = vmatpush1.bf16.msra.mxu0 %v302
    %540 = vmatprep.subr.bf16.mxu0 0
    %541 = vmatpush1.bf16.msra.mxu0 %v301
    %542 = vmatprep.subr.bf16.mxu0 0
    %543 = vmatpush1.bf16.msra.mxu0 %v300
    %544 = vmatprep.subr.bf16.mxu0 0
    %545 = vmatpush1.bf16.msra.mxu0 %v299
    %546 = vmatprep.subr.bf16.mxu0 0
    %547 = vmatpush1.bf16.msra.mxu0 %v298
    %548 = vmatprep.subr.bf16.mxu0 0
    %549 = vmatpush2.bf16.msra.mxu0 0
    %550 = vmatprep.subr.bf16.mxu0 0
    %551 = vmatpush2.bf16.msra.mxu0 0
    %552 = vmatprep.subr.bf16.mxu0 0
    %553 = vmatpush2.bf16.msra.mxu0 0
    %554 = vmatprep.subr.bf16.mxu0 0
    %555 = vmatpush2.bf16.msra.mxu0 0
    %556 = vmatprep.subr.bf16.mxu0 0
    %557 = vmatpush2.bf16.msra.mxu0 0
    %558 = vmatprep.subr.bf16.mxu0 0
    %559 = vmatpush2.bf16.msra.mxu0 0
    %560 = vmatprep.subr.bf16.mxu0 0
    %561 = vmatpush2.bf16.msra.mxu0 0
    %562 = vmatprep.subr.bf16.mxu0 0
    %563 = vmatpush2.bf16.msra.mxu0 0
    %564 = vmatprep.mubr.bf16.mxu0 0
    %565 = vmatmul.mubr.bf16.gmra.mxu0 %v531
    %v566 = vpop.f32.mrf.mxu0
    %v567 = vadd.f32 0.0, %v566
    %v568 = vpop.f32.mrf.mxu0
    %v569 = vpop.f32.mrf.mxu0
    %v570 = vpop.f32.mrf.mxu0
    %571 = vdwg.mxu0
    %v572 = vadd.f32 %v530, %v567
    %v573 = vtanh.pop %v572
    %s574 = scalar_lea.vmem [#allocation2], 48
    %v575 = vld [vmem:[%s574] sm:$0xff]
    %v576 = vpack.c.bf16 %v573, %v573
    %577 = vmatprep.subr.bf16.mxu0 0
    %578 = vmatpush1.bf16.msra.mxu0 %v305
    %579 = vmatprep.subr.bf16.mxu0 0
    %580 = vmatpush1.bf16.msra.mxu0 %v304
    %581 = vmatprep.subr.bf16.mxu0 0
    %582 = vmatpush1.bf16.msra.mxu0 %v303
    %583 = vmatprep.subr.bf16.mxu0 0
    %584 = vmatpush1.bf16.msra.mxu0 %v302
    %585 = vmatprep.subr.bf16.mxu0 0
    %586 = vmatpush1.bf16.msra.mxu0 %v301
    %587 = vmatprep.subr.bf16.mxu0 0
    %588 = vmatpush1.bf16.msra.mxu0 %v300
    %589 = vmatprep.subr.bf16.mxu0 0
    %590 = vmatpush1.bf16.msra.mxu0 %v299
    %591 = vmatprep.subr.bf16.mxu0 0
    %592 = vmatpush1.bf16.msra.mxu0 %v298
    %593 = vmatprep.subr.bf16.mxu0 0
    %594 = vmatpush2.bf16.msra.mxu0 0
    %595 = vmatprep.subr.bf16.mxu0 0
    %596 = vmatpush2.bf16.msra.mxu0 0
    %597 = vmatprep.subr.bf16.mxu0 0
    %598 = vmatpush2.bf16.msra.mxu0 0
    %599 = vmatprep.subr.bf16.mxu0 0
    %600 = vmatpush2.bf16.msra.mxu0 0
    %601 = vmatprep.subr.bf16.mxu0 0
    %602 = vmatpush2.bf16.msra.mxu0 0
    %603 = vmatprep.subr.bf16.mxu0 0
    %604 = vmatpush2.bf16.msra.mxu0 0
    %605 = vmatprep.subr.bf16.mxu0 0
    %606 = vmatpush2.bf16.msra.mxu0 0
    %607 = vmatprep.subr.bf16.mxu0 0
    %608 = vmatpush2.bf16.msra.mxu0 0
    %609 = vmatprep.mubr.bf16.mxu0 0
    %610 = vmatmul.mubr.bf16.gmra.mxu0 %v576
    %v611 = vpop.f32.mrf.mxu0
    %v612 = vadd.f32 0.0, %v611
    %v613 = vpop.f32.mrf.mxu0
    %v614 = vpop.f32.mrf.mxu0
    %v615 = vpop.f32.mrf.mxu0
    %616 = vdwg.mxu0
    %v617 = vadd.f32 %v575, %v612
    %v618 = vtanh.pop %v617
    %s619 = scalar_lea.vmem [#allocation2], 56
    %v620 = vld [vmem:[%s619] sm:$0xff]
    %v621 = vpack.c.bf16 %v618, %v618
    %622 = vmatprep.subr.bf16.mxu0 0
    %623 = vmatpush1.bf16.msra.mxu0 %v305
    %624 = vmatprep.subr.bf16.mxu0 0
    %625 = vmatpush1.bf16.msra.mxu0 %v304
    %626 = vmatprep.subr.bf16.mxu0 0
    %627 = vmatpush1.bf16.msra.mxu0 %v303
    %628 = vmatprep.subr.bf16.mxu0 0
    %629 = vmatpush1.bf16.msra.mxu0 %v302
    %630 = vmatprep.subr.bf16.mxu0 0
    %631 = vmatpush1.bf16.msra.mxu0 %v301
    %632 = vmatprep.subr.bf16.mxu0 0
    %633 = vmatpush1.bf16.msra.mxu0 %v300
    %634 = vmatprep.subr.bf16.mxu0 0
    %635 = vmatpush1.bf16.msra.mxu0 %v299
    %636 = vmatprep.subr.bf16.mxu0 0
    %637 = vmatpush1.bf16.msra.mxu0 %v298
    %638 = vmatprep.subr.bf16.mxu0 0
    %639 = vmatpush2.bf16.msra.mxu0 0
    %640 = vmatprep.subr.bf16.mxu0 0
    %641 = vmatpush2.bf16.msra.mxu0 0
    %642 = vmatprep.subr.bf16.mxu0 0
    %643 = vmatpush2.bf16.msra.mxu0 0
    %644 = vmatprep.subr.bf16.mxu0 0
    %645 = vmatpush2.bf16.msra.mxu0 0
    %646 = vmatprep.subr.bf16.mxu0 0
    %647 = vmatpush2.bf16.msra.mxu0 0
    %648 = vmatprep.subr.bf16.mxu0 0
    %649 = vmatpush2.bf16.msra.mxu0 0
    %650 = vmatprep.subr.bf16.mxu0 0
    %651 = vmatpush2.bf16.msra.mxu0 0
    %652 = vmatprep.subr.bf16.mxu0 0
    %653 = vmatpush2.bf16.msra.mxu0 0
    %654 = vmatprep.mubr.bf16.mxu0 0
    %655 = vmatmul.mubr.bf16.gmra.mxu0 %v621
    %v656 = vpop.f32.mrf.mxu0
    %v657 = vadd.f32 0.0, %v656
    %v658 = vpop.f32.mrf.mxu0
    %v659 = vpop.f32.mrf.mxu0
    %v660 = vpop.f32.mrf.mxu0
    %661 = vdwg.mxu0
    %v662 = vadd.f32 %v620, %v657
    %v663 = vtanh.pop %v662
    %664 = vst [vmem:[#allocation3] sm:$0xff] %v663
    %s665 = scalar_lea.vmem [#allocation2], 64
    %v666 = vld [vmem:[%s665] sm:$0xff]
    %v667 = vpack.c.bf16 %v663, %v663
    %668 = vmatprep.subr.bf16.mxu0 0
    %669 = vmatpush1.bf16.msra.mxu0 %v305
    %670 = vmatprep.subr.bf16.mxu0 0
    %671 = vmatpush1.bf16.msra.mxu0 %v304
    %672 = vmatprep.subr.bf16.mxu0 0
    %673 = vmatpush1.bf16.msra.mxu0 %v303
    %674 = vmatprep.subr.bf16.mxu0 0
    %675 = vmatpush1.bf16.msra.mxu0 %v302
    %676 = vmatprep.subr.bf16.mxu0 0
    %677 = vmatpush1.bf16.msra.mxu0 %v301
    %678 = vmatprep.subr.bf16.mxu0 0
    %679 = vmatpush1.bf16.msra.mxu0 %v300
    %680 = vmatprep.subr.bf16.mxu0 0
    %681 = vmatpush1.bf16.msra.mxu0 %v299
    %682 = vmatprep.subr.bf16.mxu0 0
    %683 = vmatpush1.bf16.msra.mxu0 %v298
    %684 = vmatprep.subr.bf16.mxu0 0
    %685 = vmatpush2.bf16.msra.mxu0 0
    %686 = vmatprep.subr.bf16.mxu0 0
    %687 = vmatpush2.bf16.msra.mxu0 0
    %688 = vmatprep.subr.bf16.mxu0 0
    %689 = vmatpush2.bf16.msra.mxu0 0
    %690 = vmatprep.subr.bf16.mxu0 0
    %691 = vmatpush2.bf16.msra.mxu0 0
    %692 = vmatprep.subr.bf16.mxu0 0
    %693 = vmatpush2.bf16.msra.mxu0 0
    %694 = vmatprep.subr.bf16.mxu0 0
    %695 = vmatpush2.bf16.msra.mxu0 0
    %696 = vmatprep.subr.bf16.mxu0 0
    %697 = vmatpush2.bf16.msra.mxu0 0
    %698 = vmatprep.subr.bf16.mxu0 0
    %699 = vmatpush2.bf16.msra.mxu0 0
    %700 = vmatprep.mubr.bf16.mxu0 0
    %701 = vmatmul.mubr.bf16.gmra.mxu0 %v667
    %v702 = vpop.f32.mrf.mxu0
    %v703 = vadd.f32 0.0, %v702
    %v704 = vpop.f32.mrf.mxu0
    %v705 = vpop.f32.mrf.mxu0
    %v706 = vpop.f32.mrf.mxu0
    %707 = vdwg.mxu0
    %v708 = vadd.f32 %v666, %v703
    %v709 = vtanh.pop %v708
    %s710 = scalar_lea.vmem [#allocation2], 72
    %v711 = vld [vmem:[%s710] sm:$0xff]
    %v712 = vpack.c.bf16 %v709, %v709
    %713 = vmatprep.subr.bf16.mxu0 0
    %714 = vmatpush1.bf16.msra.mxu0 %v305
    %715 = vmatprep.subr.bf16.mxu0 0
    %716 = vmatpush1.bf16.msra.mxu0 %v304
    %717 = vmatprep.subr.bf16.mxu0 0
    %718 = vmatpush1.bf16.msra.mxu0 %v303
    %719 = vmatprep.subr.bf16.mxu0 0
    %720 = vmatpush1.bf16.msra.mxu0 %v302
    %721 = vmatprep.subr.bf16.mxu0 0
    %722 = vmatpush1.bf16.msra.mxu0 %v301
    %723 = vmatprep.subr.bf16.mxu0 0
    %724 = vmatpush1.bf16.msra.mxu0 %v300
    %725 = vmatprep.subr.bf16.mxu0 0
    %726 = vmatpush1.bf16.msra.mxu0 %v299
    %727 = vmatprep.subr.bf16.mxu0 0
    %728 = vmatpush1.bf16.msra.mxu0 %v298
    %729 = vmatprep.subr.bf16.mxu0 0
    %730 = vmatpush2.bf16.msra.mxu0 0
    %731 = vmatprep.subr.bf16.mxu0 0
    %732 = vmatpush2.bf16.msra.mxu0 0
    %733 = vmatprep.subr.bf16.mxu0 0
    %734 = vmatpush2.bf16.msra.mxu0 0
    %735 = vmatprep.subr.bf16.mxu0 0
    %736 = vmatpush2.bf16.msra.mxu0 0
    %737 = vmatprep.subr.bf16.mxu0 0
    %738 = vmatpush2.bf16.msra.mxu0 0
    %739 = vmatprep.subr.bf16.mxu0 0
    %740 = vmatpush2.bf16.msra.mxu0 0
    %741 = vmatprep.subr.bf16.mxu0 0
    %742 = vmatpush2.bf16.msra.mxu0 0
    %743 = vmatprep.subr.bf16.mxu0 0
    %744 = vmatpush2.bf16.msra.mxu0 0
    %745 = vmatprep.mubr.bf16.mxu0 0
    %746 = vmatmul.mubr.bf16.gmra.mxu0 %v712
    %v747 = vpop.f32.mrf.mxu0
    %v748 = vadd.f32 0.0, %v747
    %v749 = vpop.f32.mrf.mxu0
    %v750 = vpop.f32.mrf.mxu0
    %v751 = vpop.f32.mrf.mxu0
    %752 = vdwg.mxu0
    %v753 = vadd.f32 %v711, %v748
    %v754 = vtanh.pop %v753
    %s755 = scalar_lea.vmem [#allocation2], 80
    %v756 = vld [vmem:[%s755] sm:$0xff]
    %v757 = vpack.c.bf16 %v754, %v754
    %758 = vmatprep.subr.bf16.mxu0 0
    %759 = vmatpush1.bf16.msra.mxu0 %v305
    %760 = vmatprep.subr.bf16.mxu0 0
    %761 = vmatpush1.bf16.msra.mxu0 %v304
    %762 = vmatprep.subr.bf16.mxu0 0
    %763 = vmatpush1.bf16.msra.mxu0 %v303
    %764 = vmatprep.subr.bf16.mxu0 0
    %765 = vmatpush1.bf16.msra.mxu0 %v302
    %766 = vmatprep.subr.bf16.mxu0 0
    %767 = vmatpush1.bf16.msra.mxu0 %v301
    %768 = vmatprep.subr.bf16.mxu0 0
    %769 = vmatpush1.bf16.msra.mxu0 %v300
    %770 = vmatprep.subr.bf16.mxu0 0
    %771 = vmatpush1.bf16.msra.mxu0 %v299
    %772 = vmatprep.subr.bf16.mxu0 0
    %773 = vmatpush1.bf16.msra.mxu0 %v298
    %774 = vmatprep.subr.bf16.mxu0 0
    %775 = vmatpush2.bf16.msra.mxu0 0
    %776 = vmatprep.subr.bf16.mxu0 0
    %777 = vmatpush2.bf16.msra.mxu0 0
    %778 = vmatprep.subr.bf16.mxu0 0
    %779 = vmatpush2.bf16.msra.mxu0 0
    %780 = vmatprep.subr.bf16.mxu0 0
    %781 = vmatpush2.bf16.msra.mxu0 0
    %782 = vmatprep.subr.bf16.mxu0 0
    %783 = vmatpush2.bf16.msra.mxu0 0
    %784 = vmatprep.subr.bf16.mxu0 0
    %785 = vmatpush2.bf16.msra.mxu0 0
    %786 = vmatprep.subr.bf16.mxu0 0
    %787 = vmatpush2.bf16.msra.mxu0 0
    %788 = vmatprep.subr.bf16.mxu0 0
    %789 = vmatpush2.bf16.msra.mxu0 0
    %790 = vmatprep.mubr.bf16.mxu0 0
    %791 = vmatmul.mubr.bf16.gmra.mxu0 %v757
    %v792 = vpop.f32.mrf.mxu0
    %v793 = vadd.f32 0.0, %v792
    %v794 = vpop.f32.mrf.mxu0
    %v795 = vpop.f32.mrf.mxu0
    %v796 = vpop.f32.mrf.mxu0
    %797 = vdwg.mxu0
    %v798 = vadd.f32 %v756, %v793
    %v799 = vtanh.pop %v798
    %s800 = scalar_lea.vmem [#allocation2], 88
    %v801 = vld [vmem:[%s800] sm:$0xff]
    %v802 = vpack.c.bf16 %v799, %v799
    %803 = vmatprep.subr.bf16.mxu0 0
    %804 = vmatpush1.bf16.msra.mxu0 %v305
    %805 = vmatprep.subr.bf16.mxu0 0
    %806 = vmatpush1.bf16.msra.mxu0 %v304
    %807 = vmatprep.subr.bf16.mxu0 0
    %808 = vmatpush1.bf16.msra.mxu0 %v303
    %809 = vmatprep.subr.bf16.mxu0 0
    %810 = vmatpush1.bf16.msra.mxu0 %v302
    %811 = vmatprep.subr.bf16.mxu0 0
    %812 = vmatpush1.bf16.msra.mxu0 %v301
    %813 = vmatprep.subr.bf16.mxu0 0
    %814 = vmatpush1.bf16.msra.mxu0 %v300
    %815 = vmatprep.subr.bf16.mxu0 0
    %816 = vmatpush1.bf16.msra.mxu0 %v299
    %817 = vmatprep.subr.bf16.mxu0 0
    %818 = vmatpush1.bf16.msra.mxu0 %v298
    %819 = vmatprep.subr.bf16.mxu0 0
    %820 = vmatpush2.bf16.msra.mxu0 0
    %821 = vmatprep.subr.bf16.mxu0 0
    %822 = vmatpush2.bf16.msra.mxu0 0
    %823 = vmatprep.subr.bf16.mxu0 0
    %824 = vmatpush2.bf16.msra.mxu0 0
    %825 = vmatprep.subr.bf16.mxu0 0
    %826 = vmatpush2.bf16.msra.mxu0 0
    %827 = vmatprep.subr.bf16.mxu0 0
    %828 = vmatpush2.bf16.msra.mxu0 0
    %829 = vmatprep.subr.bf16.mxu0 0
    %830 = vmatpush2.bf16.msra.mxu0 0
    %831 = vmatprep.subr.bf16.mxu0 0
    %832 = vmatpush2.bf16.msra.mxu0 0
    %833 = vmatprep.subr.bf16.mxu0 0
    %834 = vmatpush2.bf16.msra.mxu0 0
    %835 = vmatprep.mubr.bf16.mxu0 0
    %836 = vmatmul.mubr.bf16.gmra.mxu0 %v802
    %v837 = vpop.f32.mrf.mxu0
    %v838 = vadd.f32 0.0, %v837
    %v839 = vpop.f32.mrf.mxu0
    %v840 = vpop.f32.mrf.mxu0
    %v841 = vpop.f32.mrf.mxu0
    %842 = vdwg.mxu0
    %v843 = vadd.f32 %v801, %v838
    %v844 = vtanh.pop %v843
    %s845 = scalar_lea.vmem [#allocation2], 96
    %v846 = vld [vmem:[%s845] sm:$0xff]
    %v847 = vpack.c.bf16 %v844, %v844
    %848 = vmatprep.subr.bf16.mxu0 0
    %849 = vmatpush1.bf16.msra.mxu0 %v305
    %850 = vmatprep.subr.bf16.mxu0 0
    %851 = vmatpush1.bf16.msra.mxu0 %v304
    %852 = vmatprep.subr.bf16.mxu0 0
    %853 = vmatpush1.bf16.msra.mxu0 %v303
    %854 = vmatprep.subr.bf16.mxu0 0
    %855 = vmatpush1.bf16.msra.mxu0 %v302
    %856 = vmatprep.subr.bf16.mxu0 0
    %857 = vmatpush1.bf16.msra.mxu0 %v301
    %858 = vmatprep.subr.bf16.mxu0 0
    %859 = vmatpush1.bf16.msra.mxu0 %v300
    %860 = vmatprep.subr.bf16.mxu0 0
    %861 = vmatpush1.bf16.msra.mxu0 %v299
    %862 = vmatprep.subr.bf16.mxu0 0
    %863 = vmatpush1.bf16.msra.mxu0 %v298
    %864 = vmatprep.subr.bf16.mxu0 0
    %865 = vmatpush2.bf16.msra.mxu0 0
    %866 = vmatprep.subr.bf16.mxu0 0
    %867 = vmatpush2.bf16.msra.mxu0 0
    %868 = vmatprep.subr.bf16.mxu0 0
    %869 = vmatpush2.bf16.msra.mxu0 0
    %870 = vmatprep.subr.bf16.mxu0 0
    %871 = vmatpush2.bf16.msra.mxu0 0
    %872 = vmatprep.subr.bf16.mxu0 0
    %873 = vmatpush2.bf16.msra.mxu0 0
    %874 = vmatprep.subr.bf16.mxu0 0
    %875 = vmatpush2.bf16.msra.mxu0 0
    %876 = vmatprep.subr.bf16.mxu0 0
    %877 = vmatpush2.bf16.msra.mxu0 0
    %878 = vmatprep.subr.bf16.mxu0 0
    %879 = vmatpush2.bf16.msra.mxu0 0
    %880 = vmatprep.mubr.bf16.mxu0 0
    %881 = vmatmul.mubr.bf16.gmra.mxu0 %v847
    %v882 = vpop.f32.mrf.mxu0
    %v883 = vadd.f32 0.0, %v882
    %v884 = vpop.f32.mrf.mxu0
    %v885 = vpop.f32.mrf.mxu0
    %v886 = vpop.f32.mrf.mxu0
    %887 = vdwg.mxu0
    %v888 = vadd.f32 %v846, %v883
    %v889 = vtanh.pop %v888
    %s890 = scalar_lea.vmem [#allocation2], 104
    %v891 = vld [vmem:[%s890] sm:$0xff]
    %v892 = vpack.c.bf16 %v889, %v889
    %893 = vmatprep.subr.bf16.mxu0 0
    %894 = vmatpush1.bf16.msra.mxu0 %v305
    %895 = vmatprep.subr.bf16.mxu0 0
    %896 = vmatpush1.bf16.msra.mxu0 %v304
    %897 = vmatprep.subr.bf16.mxu0 0
    %898 = vmatpush1.bf16.msra.mxu0 %v303
    %899 = vmatprep.subr.bf16.mxu0 0
    %900 = vmatpush1.bf16.msra.mxu0 %v302
    %901 = vmatprep.subr.bf16.mxu0 0
    %902 = vmatpush1.bf16.msra.mxu0 %v301
    %903 = vmatprep.subr.bf16.mxu0 0
    %904 = vmatpush1.bf16.msra.mxu0 %v300
    %905 = vmatprep.subr.bf16.mxu0 0
    %906 = vmatpush1.bf16.msra.mxu0 %v299
    %907 = vmatprep.subr.bf16.mxu0 0
    %908 = vmatpush1.bf16.msra.mxu0 %v298
    %909 = vmatprep.subr.bf16.mxu0 0
    %910 = vmatpush2.bf16.msra.mxu0 0
    %911 = vmatprep.subr.bf16.mxu0 0
    %912 = vmatpush2.bf16.msra.mxu0 0
    %913 = vmatprep.subr.bf16.mxu0 0
    %914 = vmatpush2.bf16.msra.mxu0 0
    %915 = vmatprep.subr.bf16.mxu0 0
    %916 = vmatpush2.bf16.msra.mxu0 0
    %917 = vmatprep.subr.bf16.mxu0 0
    %918 = vmatpush2.bf16.msra.mxu0 0
    %919 = vmatprep.subr.bf16.mxu0 0
    %920 = vmatpush2.bf16.msra.mxu0 0
    %921 = vmatprep.subr.bf16.mxu0 0
    %922 = vmatpush2.bf16.msra.mxu0 0
    %923 = vmatprep.subr.bf16.mxu0 0
    %924 = vmatpush2.bf16.msra.mxu0 0
    %925 = vmatprep.mubr.bf16.mxu0 0
    %926 = vmatmul.mubr.bf16.gmra.mxu0 %v892
    %v927 = vpop.f32.mrf.mxu0
    %v928 = vadd.f32 0.0, %v927
    %v929 = vpop.f32.mrf.mxu0
    %v930 = vpop.f32.mrf.mxu0
    %v931 = vpop.f32.mrf.mxu0
    %932 = vdwg.mxu0
    %v933 = vadd.f32 %v891, %v928
    %v934 = vtanh.pop %v933
    %s935 = scalar_lea.vmem [#allocation2], 112
    %v936 = vld [vmem:[%s935] sm:$0xff]
    %v937 = vpack.c.bf16 %v934, %v934
    %938 = vmatprep.subr.bf16.mxu0 0
    %939 = vmatpush1.bf16.msra.mxu0 %v305
    %940 = vmatprep.subr.bf16.mxu0 0
    %941 = vmatpush1.bf16.msra.mxu0 %v304
    %942 = vmatprep.subr.bf16.mxu0 0
    %943 = vmatpush1.bf16.msra.mxu0 %v303
    %944 = vmatprep.subr.bf16.mxu0 0
    %945 = vmatpush1.bf16.msra.mxu0 %v302
    %946 = vmatprep.subr.bf16.mxu0 0
    %947 = vmatpush1.bf16.msra.mxu0 %v301
    %948 = vmatprep.subr.bf16.mxu0 0
    %949 = vmatpush1.bf16.msra.mxu0 %v300
    %950 = vmatprep.subr.bf16.mxu0 0
    %951 = vmatpush1.bf16.msra.mxu0 %v299
    %952 = vmatprep.subr.bf16.mxu0 0
    %953 = vmatpush1.bf16.msra.mxu0 %v298
    %954 = vmatprep.subr.bf16.mxu0 0
    %955 = vmatpush2.bf16.msra.mxu0 0
    %956 = vmatprep.subr.bf16.mxu0 0
    %957 = vmatpush2.bf16.msra.mxu0 0
    %958 = vmatprep.subr.bf16.mxu0 0
    %959 = vmatpush2.bf16.msra.mxu0 0
    %960 = vmatprep.subr.bf16.mxu0 0
    %961 = vmatpush2.bf16.msra.mxu0 0
    %962 = vmatprep.subr.bf16.mxu0 0
    %963 = vmatpush2.bf16.msra.mxu0 0
    %964 = vmatprep.subr.bf16.mxu0 0
    %965 = vmatpush2.bf16.msra.mxu0 0
    %966 = vmatprep.subr.bf16.mxu0 0
    %967 = vmatpush2.bf16.msra.mxu0 0
    %968 = vmatprep.subr.bf16.mxu0 0
    %969 = vmatpush2.bf16.msra.mxu0 0
    %970 = vmatprep.mubr.bf16.mxu0 0
    %971 = vmatmul.mubr.bf16.gmra.mxu0 %v937
    %v972 = vpop.f32.mrf.mxu0
    %v973 = vadd.f32 0.0, %v972
    %v974 = vpop.f32.mrf.mxu0
    %v975 = vpop.f32.mrf.mxu0
    %v976 = vpop.f32.mrf.mxu0
    %977 = vdwg.mxu0
    %v978 = vadd.f32 %v936, %v973
    %v979 = vtanh.pop %v978
    %s980 = scalar_lea.vmem [#allocation2], 120
    %v981 = vld [vmem:[%s980] sm:$0xff]
    %v982 = vpack.c.bf16 %v979, %v979
    %983 = vmatprep.subr.bf16.mxu0 0
    %984 = vmatpush1.bf16.msra.mxu0 %v305
    %985 = vmatprep.subr.bf16.mxu0 0
    %986 = vmatpush1.bf16.msra.mxu0 %v304
    %987 = vmatprep.subr.bf16.mxu0 0
    %988 = vmatpush1.bf16.msra.mxu0 %v303
    %989 = vmatprep.subr.bf16.mxu0 0
    %990 = vmatpush1.bf16.msra.mxu0 %v302
    %991 = vmatprep.subr.bf16.mxu0 0
    %992 = vmatpush1.bf16.msra.mxu0 %v301
    %993 = vmatprep.subr.bf16.mxu0 0
    %994 = vmatpush1.bf16.msra.mxu0 %v300
    %995 = vmatprep.subr.bf16.mxu0 0
    %996 = vmatpush1.bf16.msra.mxu0 %v299
    %997 = vmatprep.subr.bf16.mxu0 0
    %998 = vmatpush1.bf16.msra.mxu0 %v298
    %999 = vmatprep.subr.bf16.mxu0 0
    %1000 = vmatpush2.bf16.msra.mxu0 0
    %1001 = vmatprep.subr.bf16.mxu0 0
    %1002 = vmatpush2.bf16.msra.mxu0 0
    %1003 = vmatprep.subr.bf16.mxu0 0
    %1004 = vmatpush2.bf16.msra.mxu0 0
    %1005 = vmatprep.subr.bf16.mxu0 0
    %1006 = vmatpush2.bf16.msra.mxu0 0
    %1007 = vmatprep.subr.bf16.mxu0 0
    %1008 = vmatpush2.bf16.msra.mxu0 0
    %1009 = vmatprep.subr.bf16.mxu0 0
    %1010 = vmatpush2.bf16.msra.mxu0 0
    %1011 = vmatprep.subr.bf16.mxu0 0
    %1012 = vmatpush2.bf16.msra.mxu0 0
    %1013 = vmatprep.subr.bf16.mxu0 0
    %1014 = vmatpush2.bf16.msra.mxu0 0
    %1015 = vmatprep.mubr.bf16.mxu0 0
    %1016 = vmatmul.mubr.bf16.gmra.mxu0 %v982
    %v1017 = vpop.f32.mrf.mxu0
    %v1018 = vadd.f32 0.0, %v1017
    %v1019 = vpop.f32.mrf.mxu0
    %v1020 = vpop.f32.mrf.mxu0
    %v1021 = vpop.f32.mrf.mxu0
    %1022 = vdwg.mxu0
    %v1023 = vadd.f32 %v981, %v1018
    %v1024 = vtanh.pop %v1023
    %s1025 = scalar_lea.vmem [#allocation3], 8
    %1026 = vst [vmem:[%s1025] sm:$0xff] %v1024
    %v1027 = vld [vmem:[#allocation3] sm:$0xff]
    %v1028 = vld [vmem:[#allocation3 + $0x8] sm:$0xff]
    %v1029 = vld [vmem:[%s4] sm:$0xff]
    %v1030 = vld [vmem:[%s4 + $0x8] sm:$0xff]
    %v1031 = vld [vmem:[%s4 + $0x10] sm:$0xff]
    %v1032 = vld [vmem:[%s4 + $0x18] sm:$0xff]
    %v1033 = vld [vmem:[%s4 + $0x20] sm:$0xff]
    %v1034 = vld [vmem:[%s4 + $0x28] sm:$0xff]
    %v1035 = vld [vmem:[%s4 + $0x30] sm:$0xff]
    %v1036 = vld [vmem:[%s4 + $0x38] sm:$0xff]
    %v1037 = vld [vmem:[%s4 + $0x40] sm:$0xff]
    %v1038 = vld [vmem:[%s4 + $0x48] sm:$0xff]
    %v1039 = vld [vmem:[%s4 + $0x50] sm:$0xff]
    %v1040 = vld [vmem:[%s4 + $0x58] sm:$0xff]
    %v1041 = vld [vmem:[%s4 + $0x60] sm:$0xff]
    %v1042 = vld [vmem:[%s4 + $0x68] sm:$0xff]
    %v1043 = vld [vmem:[%s4 + $0x70] sm:$0xff]
    %v1044 = vld [vmem:[%s4 + $0x78] sm:$0xff]
    %v1045 = vld [vmem:[%s6] sm:$0x1]
    %v1047 = vlaneseq
    %v1048 = vshrl.u32 %v1047, 7
    %v1049 = vsub.s32 0, %v1048
    %v1050 = vrot.slane %v1045, %v1049
    %1052 = vmatprep.subr.mxu0 0.0
    %1053 = vmatpush1.msra.mxu0 %v1044
    %1054 = vmatprep.subr.mxu0 0.0
    %1055 = vmatpush1.msra.mxu0 %v1043
    %1056 = vmatprep.subr.mxu0 0.0
    %1057 = vmatpush1.msra.mxu0 %v1042
    %1058 = vmatprep.subr.mxu0 0.0
    %1059 = vmatpush1.msra.mxu0 %v1041
    %1060 = vmatprep.subr.mxu0 0.0
    %1061 = vmatpush1.msra.mxu0 %v1040
    %1062 = vmatprep.subr.mxu0 0.0
    %1063 = vmatpush1.msra.mxu0 %v1039
    %1064 = vmatprep.subr.mxu0 0.0
    %1065 = vmatpush1.msra.mxu0 %v1038
    %1066 = vmatprep.subr.mxu0 0.0
    %1067 = vmatpush1.msra.mxu0 %v1037
    %1068 = vmatprep.subr.mxu0 0.0
    %1069 = vmatpush1.msra.mxu0 %v1036
    %1070 = vmatprep.subr.mxu0 0.0
    %1071 = vmatpush1.msra.mxu0 %v1035
    %1072 = vmatprep.subr.mxu0 0.0
    %1073 = vmatpush1.msra.mxu0 %v1034
    %1074 = vmatprep.subr.mxu0 0.0
    %1075 = vmatpush1.msra.mxu0 %v1033
    %1076 = vmatprep.subr.mxu0 0.0
    %1077 = vmatpush1.msra.mxu0 %v1032
    %1078 = vmatprep.subr.mxu0 0.0
    %1079 = vmatpush1.msra.mxu0 %v1031
    %1080 = vmatprep.subr.mxu0 0.0
    %1081 = vmatpush1.msra.mxu0 %v1030
    %1082 = vmatprep.subr.mxu0 0.0
    %1083 = vmatpush1.msra.mxu0 %v1029
    %1084 = vmatprep.subr.mxu0 0.0
    %1085 = vmatpush2.msra.mxu0 0.0
    %1086 = vmatprep.subr.mxu0 0.0
    %1087 = vmatpush2.msra.mxu0 0.0
    %1088 = vmatprep.subr.mxu0 0.0
    %1089 = vmatpush2.msra.mxu0 0.0
    %1090 = vmatprep.subr.mxu0 0.0
    %1091 = vmatpush2.msra.mxu0 0.0
    %1092 = vmatprep.subr.mxu0 0.0
    %1093 = vmatpush2.msra.mxu0 0.0
    %1094 = vmatprep.subr.mxu0 0.0
    %1095 = vmatpush2.msra.mxu0 0.0
    %1096 = vmatprep.subr.mxu0 0.0
    %1097 = vmatpush2.msra.mxu0 0.0
    %1098 = vmatprep.subr.mxu0 0.0
    %1099 = vmatpush2.msra.mxu0 0.0
    %1100 = vmatprep.subr.mxu0 0.0
    %1101 = vmatpush2.msra.mxu0 0.0
    %1102 = vmatprep.subr.mxu0 0.0
    %1103 = vmatpush2.msra.mxu0 0.0
    %1104 = vmatprep.subr.mxu0 0.0
    %1105 = vmatpush2.msra.mxu0 0.0
    %1106 = vmatprep.subr.mxu0 0.0
    %1107 = vmatpush2.msra.mxu0 0.0
    %1108 = vmatprep.subr.mxu0 0.0
    %1109 = vmatpush2.msra.mxu0 0.0
    %1110 = vmatprep.subr.mxu0 0.0
    %1111 = vmatpush2.msra.mxu0 0.0
    %1112 = vmatprep.subr.mxu0 0.0
    %1113 = vmatpush2.msra.mxu0 0.0
    %1114 = vmatprep.subr.mxu0 0.0
    %1115 = vmatpush2.msra.mxu0 0.0
    %1116 = vmatprep.mubr.f32.mxu0 0.0
    %1117 = vmatmul.mubr.f32.gmra.mxu0 %v1027
    %v1118 = vpop.f32.mrf.mxu0
    %v1119 = vadd.f32 %v1050, %v1118
    %v1120 = vpop.f32.mrf.mxu0
    %1121 = vmatprep.mubr.f32.mxu0 0.0
    %1122 = vmatmul.mubr.f32.gmra.mxu0 %v1028
    %v1123 = vpop.f32.mrf.mxu0
    %v1124 = vadd.f32 %v1050, %v1123
    %v1125 = vpop.f32.mrf.mxu0
    %1126 = vdwg.mxu0
    %1127 = vst [vmem:[#allocation4] sm:$0xff] %v1119
    %1128 = vst [vmem:[#allocation4 + $0x8] sm:$0xff] %v1124
    %v1129 = vld [vmem:[#allocation5] sm:$0xff]
    %v1130 = vld [vmem:[#allocation5 + $0x8] sm:$0xff]
    %v1131 = vld [vmem:[#allocation5 + $0x10] sm:$0xff]
    %v1132 = vld [vmem:[#allocation5 + $0x18] sm:$0xff]
    %v1133 = vld [vmem:[#allocation5 + $0x20] sm:$0xff]
    %v1134 = vld [vmem:[#allocation5 + $0x28] sm:$0xff]
    %v1135 = vld [vmem:[#allocation5 + $0x30] sm:$0xff]
    %v1136 = vld [vmem:[#allocation5 + $0x38] sm:$0xff]
    %v1137 = vld [vmem:[#allocation5 + $0x40] sm:$0xff]
    %v1138 = vld [vmem:[#allocation5 + $0x48] sm:$0xff]
    %v1139 = vld [vmem:[#allocation5 + $0x50] sm:$0xff]
    %v1140 = vld [vmem:[#allocation5 + $0x58] sm:$0xff]
    %v1141 = vld [vmem:[#allocation5 + $0x60] sm:$0xff]
    %v1142 = vld [vmem:[#allocation5 + $0x68] sm:$0xff]
    %v1143 = vld [vmem:[#allocation5 + $0x70] sm:$0xff]
    %v1144 = vld [vmem:[#allocation5 + $0x78] sm:$0xff]
    %v1145 = vpack.c.bf16 %v1130, %v1129
    %v1146 = vpack.c.bf16 %v1132, %v1131
    %v1147 = vpack.c.bf16 %v1134, %v1133
    %v1148 = vpack.c.bf16 %v1136, %v1135
    %v1149 = vpack.c.bf16 %v1138, %v1137
    %v1150 = vpack.c.bf16 %v1140, %v1139
    %v1151 = vpack.c.bf16 %v1142, %v1141
    %v1152 = vpack.c.bf16 %v1144, %v1143
    %v1153 = vld [vmem:[#allocation4] sm:$0x1]
    %v1154 = vld [vmem:[#allocation4 + $0x8] sm:$0x1]
    %1155 = vmatprep.subr.bf16.mxu0 0
    %1156 = vmatpush1.bf16.msra.mxu0 %v1152
    %1157 = vmatprep.subr.bf16.mxu0 0
    %1158 = vmatpush1.bf16.msra.mxu0 %v1151
    %1159 = vmatprep.subr.bf16.mxu0 0
    %1160 = vmatpush1.bf16.msra.mxu0 %v1150
    %1161 = vmatprep.subr.bf16.mxu0 0
    %1162 = vmatpush1.bf16.msra.mxu0 %v1149
    %1163 = vmatprep.subr.bf16.mxu0 0
    %1164 = vmatpush1.bf16.msra.mxu0 %v1148
    %1165 = vmatprep.subr.bf16.mxu0 0
    %1166 = vmatpush1.bf16.msra.mxu0 %v1147
    %1167 = vmatprep.subr.bf16.mxu0 0
    %1168 = vmatpush1.bf16.msra.mxu0 %v1146
    %1169 = vmatprep.subr.bf16.mxu0 0
    %1170 = vmatpush1.bf16.msra.mxu0 %v1145
    %1171 = vmatprep.subr.bf16.mxu0 0
    %1172 = vmatpush2.bf16.msra.mxu0 0
    %1173 = vmatprep.subr.bf16.mxu0 0
    %1174 = vmatpush2.bf16.msra.mxu0 0
    %1175 = vmatprep.subr.bf16.mxu0 0
    %1176 = vmatpush2.bf16.msra.mxu0 0
    %1177 = vmatprep.subr.bf16.mxu0 0
    %1178 = vmatpush2.bf16.msra.mxu0 0
    %1179 = vmatprep.subr.bf16.mxu0 0
    %1180 = vmatpush2.bf16.msra.mxu0 0
    %1181 = vmatprep.subr.bf16.mxu0 0
    %1182 = vmatpush2.bf16.msra.mxu0 0
    %1183 = vmatprep.subr.bf16.mxu0 0
    %1184 = vmatpush2.bf16.msra.mxu0 0
    %1185 = vmatprep.subr.bf16.mxu0 0
    %1186 = vmatpush2.bf16.msra.mxu0 0
    %1187 = vmatprep.mubr.bf16.mxu0 0
    %1188 = vmatmul.mubr.bf16.gmra.mxu0 0
    %v1189 = vpop.f32.mrf.mxu0
    %v1190 = vadd.f32 0.0, %v1189
    %v1191 = vpop.f32.mrf.mxu0
    %v1192 = vpop.f32.mrf.mxu0
    %v1193 = vpop.f32.mrf.mxu0
    %1194 = vdwg.mxu0
    %v1196 = vrot.slane %v1190, 1
    %v1199 = vadd.f32 %v1153, %v1190
    %v1200 = vadd.f32 %v1154, %v1196
    %v1201 = vtanh.pop %v1199
    %v1202 = vtanh.pop %v1200
    %v1203 = vld [vmem:[#allocation4 + $0x1] sm:$0x1]
    %v1204 = vld [vmem:[#allocation4 + $0x9] sm:$0x1]
    %v1205 = vpack.c.bf16 %v1201, %v1201
    %v1206 = vpack.c.bf16 %v1202, %v1202
    %v1209 = vunpack.c.l.b16 %v1205
    %v1210 = vunpack.c.l.b16 %v1206
    %v1211 = vrot.slane %v1210, 7
    %vm1212 = vcmask 1041409
    %v1213 = vsel %vm1212, %v1211, %v1209
    %v1214 = vpack.c.b16 %v1213, %v1213
    %1216 = vmatprep.subr.bf16.mxu0 0
    %1217 = vmatpush1.bf16.msra.mxu0 %v1152
    %1218 = vmatprep.subr.bf16.mxu0 0
    %1219 = vmatpush1.bf16.msra.mxu0 %v1151
    %1220 = vmatprep.subr.bf16.mxu0 0
    %1221 = vmatpush1.bf16.msra.mxu0 %v1150
    %1222 = vmatprep.subr.bf16.mxu0 0
    %1223 = vmatpush1.bf16.msra.mxu0 %v1149
    %1224 = vmatprep.subr.bf16.mxu0 0
    %1225 = vmatpush1.bf16.msra.mxu0 %v1148
    %1226 = vmatprep.subr.bf16.mxu0 0
    %1227 = vmatpush1.bf16.msra.mxu0 %v1147
    %1228 = vmatprep.subr.bf16.mxu0 0
    %1229 = vmatpush1.bf16.msra.mxu0 %v1146
    %1230 = vmatprep.subr.bf16.mxu0 0
    %1231 = vmatpush1.bf16.msra.mxu0 %v1145
    %1232 = vmatprep.subr.bf16.mxu0 0
    %1233 = vmatpush2.bf16.msra.mxu0 0
    %1234 = vmatprep.subr.bf16.mxu0 0
    %1235 = vmatpush2.bf16.msra.mxu0 0
    %1236 = vmatprep.subr.bf16.mxu0 0
    %1237 = vmatpush2.bf16.msra.mxu0 0
    %1238 = vmatprep.subr.bf16.mxu0 0
    %1239 = vmatpush2.bf16.msra.mxu0 0
    %1240 = vmatprep.subr.bf16.mxu0 0
    %1241 = vmatpush2.bf16.msra.mxu0 0
    %1242 = vmatprep.subr.bf16.mxu0 0
    %1243 = vmatpush2.bf16.msra.mxu0 0
    %1244 = vmatprep.subr.bf16.mxu0 0
    %1245 = vmatpush2.bf16.msra.mxu0 0
    %1246 = vmatprep.subr.bf16.mxu0 0
    %1247 = vmatpush2.bf16.msra.mxu0 0
    %1248 = vmatprep.mubr.bf16.mxu0 0
    %1249 = vmatmul.mubr.bf16.gmra.mxu0 %v1214
    %v1250 = vpop.f32.mrf.mxu0
    %v1251 = vadd.f32 0.0, %v1250
    %v1252 = vpop.f32.mrf.mxu0
    %v1253 = vpop.f32.mrf.mxu0
    %v1254 = vpop.f32.mrf.mxu0
    %1255 = vdwg.mxu0
    %v1257 = vrot.slane %v1251, 1
    %v1260 = vadd.f32 %v1203, %v1251
    %v1261 = vadd.f32 %v1204, %v1257
    %v1262 = vtanh.pop %v1260
    %v1263 = vtanh.pop %v1261
    %v1264 = vld [vmem:[#allocation4 + $0x2] sm:$0x1]
    %v1265 = vld [vmem:[#allocation4 + $0xa] sm:$0x1]
    %v1266 = vpack.c.bf16 %v1262, %v1262
    %v1267 = vpack.c.bf16 %v1263, %v1263
    %v1270 = vunpack.c.l.b16 %v1266
    %v1271 = vunpack.c.l.b16 %v1267
    %v1272 = vrot.slane %v1271, 7
    %v1273 = vsel %vm1212, %v1272, %v1270
    %v1274 = vpack.c.b16 %v1273, %v1273
    %1276 = vmatprep.subr.bf16.mxu0 0
    %1277 = vmatpush1.bf16.msra.mxu0 %v1152
    %1278 = vmatprep.subr.bf16.mxu0 0
    %1279 = vmatpush1.bf16.msra.mxu0 %v1151
    %1280 = vmatprep.subr.bf16.mxu0 0
    %1281 = vmatpush1.bf16.msra.mxu0 %v1150
    %1282 = vmatprep.subr.bf16.mxu0 0
    %1283 = vmatpush1.bf16.msra.mxu0 %v1149
    %1284 = vmatprep.subr.bf16.mxu0 0
    %1285 = vmatpush1.bf16.msra.mxu0 %v1148
    %1286 = vmatprep.subr.bf16.mxu0 0
    %1287 = vmatpush1.bf16.msra.mxu0 %v1147
    %1288 = vmatprep.subr.bf16.mxu0 0
    %1289 = vmatpush1.bf16.msra.mxu0 %v1146
    %1290 = vmatprep.subr.bf16.mxu0 0
    %1291 = vmatpush1.bf16.msra.mxu0 %v1145
    %1292 = vmatprep.subr.bf16.mxu0 0
    %1293 = vmatpush2.bf16.msra.mxu0 0
    %1294 = vmatprep.subr.bf16.mxu0 0
    %1295 = vmatpush2.bf16.msra.mxu0 0
    %1296 = vmatprep.subr.bf16.mxu0 0
    %1297 = vmatpush2.bf16.msra.mxu0 0
    %1298 = vmatprep.subr.bf16.mxu0 0
    %1299 = vmatpush2.bf16.msra.mxu0 0
    %1300 = vmatprep.subr.bf16.mxu0 0
    %1301 = vmatpush2.bf16.msra.mxu0 0
    %1302 = vmatprep.subr.bf16.mxu0 0
    %1303 = vmatpush2.bf16.msra.mxu0 0
    %1304 = vmatprep.subr.bf16.mxu0 0
    %1305 = vmatpush2.bf16.msra.mxu0 0
    %1306 = vmatprep.subr.bf16.mxu0 0
    %1307 = vmatpush2.bf16.msra.mxu0 0
    %1308 = vmatprep.mubr.bf16.mxu0 0
    %1309 = vmatmul.mubr.bf16.gmra.mxu0 %v1274
    %v1310 = vpop.f32.mrf.mxu0
    %v1311 = vadd.f32 0.0, %v1310
    %v1312 = vpop.f32.mrf.mxu0
    %v1313 = vpop.f32.mrf.mxu0
    %v1314 = vpop.f32.mrf.mxu0
    %1315 = vdwg.mxu0
    %v1317 = vrot.slane %v1311, 1
    %v1320 = vadd.f32 %v1264, %v1311
    %v1321 = vadd.f32 %v1265, %v1317
    %v1322 = vtanh.pop %v1320
    %v1323 = vtanh.pop %v1321
    %v1324 = vld [vmem:[#allocation4 + $0x3] sm:$0x1]
    %v1325 = vld [vmem:[#allocation4 + $0xb] sm:$0x1]
    %v1326 = vpack.c.bf16 %v1322, %v1322
    %v1327 = vpack.c.bf16 %v1323, %v1323
    %v1330 = vunpack.c.l.b16 %v1326
    %v1331 = vunpack.c.l.b16 %v1327
    %v1332 = vrot.slane %v1331, 7
    %v1333 = vsel %vm1212, %v1332, %v1330
    %v1334 = vpack.c.b16 %v1333, %v1333
    %1336 = vmatprep.subr.bf16.mxu0 0
    %1337 = vmatpush1.bf16.msra.mxu0 %v1152
    %1338 = vmatprep.subr.bf16.mxu0 0
    %1339 = vmatpush1.bf16.msra.mxu0 %v1151
    %1340 = vmatprep.subr.bf16.mxu0 0
    %1341 = vmatpush1.bf16.msra.mxu0 %v1150
    %1342 = vmatprep.subr.bf16.mxu0 0
    %1343 = vmatpush1.bf16.msra.mxu0 %v1149
    %1344 = vmatprep.subr.bf16.mxu0 0
    %1345 = vmatpush1.bf16.msra.mxu0 %v1148
    %1346 = vmatprep.subr.bf16.mxu0 0
    %1347 = vmatpush1.bf16.msra.mxu0 %v1147
    %1348 = vmatprep.subr.bf16.mxu0 0
    %1349 = vmatpush1.bf16.msra.mxu0 %v1146
    %1350 = vmatprep.subr.bf16.mxu0 0
    %1351 = vmatpush1.bf16.msra.mxu0 %v1145
    %1352 = vmatprep.subr.bf16.mxu0 0
    %1353 = vmatpush2.bf16.msra.mxu0 0
    %1354 = vmatprep.subr.bf16.mxu0 0
    %1355 = vmatpush2.bf16.msra.mxu0 0
    %1356 = vmatprep.subr.bf16.mxu0 0
    %1357 = vmatpush2.bf16.msra.mxu0 0
    %1358 = vmatprep.subr.bf16.mxu0 0
    %1359 = vmatpush2.bf16.msra.mxu0 0
    %1360 = vmatprep.subr.bf16.mxu0 0
    %1361 = vmatpush2.bf16.msra.mxu0 0
    %1362 = vmatprep.subr.bf16.mxu0 0
    %1363 = vmatpush2.bf16.msra.mxu0 0
    %1364 = vmatprep.subr.bf16.mxu0 0
    %1365 = vmatpush2.bf16.msra.mxu0 0
    %1366 = vmatprep.subr.bf16.mxu0 0
    %1367 = vmatpush2.bf16.msra.mxu0 0
    %1368 = vmatprep.mubr.bf16.mxu0 0
    %1369 = vmatmul.mubr.bf16.gmra.mxu0 %v1334
    %v1370 = vpop.f32.mrf.mxu0
    %v1371 = vadd.f32 0.0, %v1370
    %v1372 = vpop.f32.mrf.mxu0
    %v1373 = vpop.f32.mrf.mxu0
    %v1374 = vpop.f32.mrf.mxu0
    %1375 = vdwg.mxu0
    %v1377 = vrot.slane %v1371, 1
    %v1380 = vadd.f32 %v1324, %v1371
    %v1381 = vadd.f32 %v1325, %v1377
    %v1382 = vtanh.pop %v1380
    %v1383 = vtanh.pop %v1381
    %v1384 = vld [vmem:[#allocation4 + $0x4] sm:$0x1]
    %v1385 = vld [vmem:[#allocation4 + $0xc] sm:$0x1]
    %v1386 = vpack.c.bf16 %v1382, %v1382
    %v1387 = vpack.c.bf16 %v1383, %v1383
    %v1390 = vunpack.c.l.b16 %v1386
    %v1391 = vunpack.c.l.b16 %v1387
    %v1392 = vrot.slane %v1391, 7
    %v1393 = vsel %vm1212, %v1392, %v1390
    %v1394 = vpack.c.b16 %v1393, %v1393
    %1396 = vmatprep.subr.bf16.mxu0 0
    %1397 = vmatpush1.bf16.msra.mxu0 %v1152
    %1398 = vmatprep.subr.bf16.mxu0 0
    %1399 = vmatpush1.bf16.msra.mxu0 %v1151
    %1400 = vmatprep.subr.bf16.mxu0 0
    %1401 = vmatpush1.bf16.msra.mxu0 %v1150
    %1402 = vmatprep.subr.bf16.mxu0 0
    %1403 = vmatpush1.bf16.msra.mxu0 %v1149
    %1404 = vmatprep.subr.bf16.mxu0 0
    %1405 = vmatpush1.bf16.msra.mxu0 %v1148
    %1406 = vmatprep.subr.bf16.mxu0 0
    %1407 = vmatpush1.bf16.msra.mxu0 %v1147
    %1408 = vmatprep.subr.bf16.mxu0 0
    %1409 = vmatpush1.bf16.msra.mxu0 %v1146
    %1410 = vmatprep.subr.bf16.mxu0 0
    %1411 = vmatpush1.bf16.msra.mxu0 %v1145
    %1412 = vmatprep.subr.bf16.mxu0 0
    %1413 = vmatpush2.bf16.msra.mxu0 0
    %1414 = vmatprep.subr.bf16.mxu0 0
    %1415 = vmatpush2.bf16.msra.mxu0 0
    %1416 = vmatprep.subr.bf16.mxu0 0
    %1417 = vmatpush2.bf16.msra.mxu0 0
    %1418 = vmatprep.subr.bf16.mxu0 0
    %1419 = vmatpush2.bf16.msra.mxu0 0
    %1420 = vmatprep.subr.bf16.mxu0 0
    %1421 = vmatpush2.bf16.msra.mxu0 0
    %1422 = vmatprep.subr.bf16.mxu0 0
    %1423 = vmatpush2.bf16.msra.mxu0 0
    %1424 = vmatprep.subr.bf16.mxu0 0
    %1425 = vmatpush2.bf16.msra.mxu0 0
    %1426 = vmatprep.subr.bf16.mxu0 0
    %1427 = vmatpush2.bf16.msra.mxu0 0
    %1428 = vmatprep.mubr.bf16.mxu0 0
    %1429 = vmatmul.mubr.bf16.gmra.mxu0 %v1394
    %v1430 = vpop.f32.mrf.mxu0
    %v1431 = vadd.f32 0.0, %v1430
    %v1432 = vpop.f32.mrf.mxu0
    %v1433 = vpop.f32.mrf.mxu0
    %v1434 = vpop.f32.mrf.mxu0
    %1435 = vdwg.mxu0
    %v1437 = vrot.slane %v1431, 1
    %v1440 = vadd.f32 %v1384, %v1431
    %v1441 = vadd.f32 %v1385, %v1437
    %v1442 = vtanh.pop %v1440
    %v1443 = vtanh.pop %v1441
    %v1444 = vld [vmem:[%s7] sm:$0xff]
    %v1445 = vld [vmem:[%s7 + $0x8] sm:$0xff]
    %v1446 = vld [vmem:[%s7 + $0x10] sm:$0xff]
    %v1447 = vld [vmem:[%s7 + $0x18] sm:$0xff]
    %v1448 = vld [vmem:[%s7 + $0x20] sm:$0xff]
    %v1449 = vld [vmem:[%s7 + $0x28] sm:$0xff]
    %v1450 = vld [vmem:[%s7 + $0x30] sm:$0xff]
    %v1451 = vld [vmem:[%s7 + $0x38] sm:$0xff]
    %v1452 = vld [vmem:[%s7 + $0x40] sm:$0xff]
    %v1453 = vld [vmem:[%s7 + $0x48] sm:$0xff]
    %v1454 = vld [vmem:[%s7 + $0x50] sm:$0xff]
    %v1455 = vld [vmem:[%s7 + $0x58] sm:$0xff]
    %v1456 = vld [vmem:[%s7 + $0x60] sm:$0xff]
    %v1457 = vld [vmem:[%s7 + $0x68] sm:$0xff]
    %v1458 = vld [vmem:[%s7 + $0x70] sm:$0xff]
    %v1459 = vld [vmem:[%s7 + $0x78] sm:$0xff]
    %v1460 = vld [vmem:[%s8] sm:$0x1]
    %v1462 = vlaneseq
    %v1463 = vshrl.u32 %v1462, 7
    %v1464 = vsub.s32 0, %v1463
    %v1465 = vrot.slane %v1460, %v1464
    %v1469 = vrot.slane %v1443, 7
    %v1470 = vsel %vm1212, %v1469, %v1442
    %1472 = vmatprep.subr.mxu0 0.0
    %1473 = vmatpush1.msra.mxu0 %v1459
    %1474 = vmatprep.subr.mxu0 0.0
    %1475 = vmatpush1.msra.mxu0 %v1458
    %1476 = vmatprep.subr.mxu0 0.0
    %1477 = vmatpush1.msra.mxu0 %v1457
    %1478 = vmatprep.subr.mxu0 0.0
    %1479 = vmatpush1.msra.mxu0 %v1456
    %1480 = vmatprep.subr.mxu0 0.0
    %1481 = vmatpush1.msra.mxu0 %v1455
    %1482 = vmatprep.subr.mxu0 0.0
    %1483 = vmatpush1.msra.mxu0 %v1454
    %1484 = vmatprep.subr.mxu0 0.0
    %1485 = vmatpush1.msra.mxu0 %v1453
    %1486 = vmatprep.subr.mxu0 0.0
    %1487 = vmatpush1.msra.mxu0 %v1452
    %1488 = vmatprep.subr.mxu0 0.0
    %1489 = vmatpush1.msra.mxu0 %v1451
    %1490 = vmatprep.subr.mxu0 0.0
    %1491 = vmatpush1.msra.mxu0 %v1450
    %1492 = vmatprep.subr.mxu0 0.0
    %1493 = vmatpush1.msra.mxu0 %v1449
    %1494 = vmatprep.subr.mxu0 0.0
    %1495 = vmatpush1.msra.mxu0 %v1448
    %1496 = vmatprep.subr.mxu0 0.0
    %1497 = vmatpush1.msra.mxu0 %v1447
    %1498 = vmatprep.subr.mxu0 0.0
    %1499 = vmatpush1.msra.mxu0 %v1446
    %1500 = vmatprep.subr.mxu0 0.0
    %1501 = vmatpush1.msra.mxu0 %v1445
    %1502 = vmatprep.subr.mxu0 0.0
    %1503 = vmatpush1.msra.mxu0 %v1444
    %1504 = vmatprep.subr.mxu0 0.0
    %1505 = vmatpush2.msra.mxu0 0.0
    %1506 = vmatprep.subr.mxu0 0.0
    %1507 = vmatpush2.msra.mxu0 0.0
    %1508 = vmatprep.subr.mxu0 0.0
    %1509 = vmatpush2.msra.mxu0 0.0
    %1510 = vmatprep.subr.mxu0 0.0
    %1511 = vmatpush2.msra.mxu0 0.0
    %1512 = vmatprep.subr.mxu0 0.0
    %1513 = vmatpush2.msra.mxu0 0.0
    %1514 = vmatprep.subr.mxu0 0.0
    %1515 = vmatpush2.msra.mxu0 0.0
    %1516 = vmatprep.subr.mxu0 0.0
    %1517 = vmatpush2.msra.mxu0 0.0
    %1518 = vmatprep.subr.mxu0 0.0
    %1519 = vmatpush2.msra.mxu0 0.0
    %1520 = vmatprep.subr.mxu0 0.0
    %1521 = vmatpush2.msra.mxu0 0.0
    %1522 = vmatprep.subr.mxu0 0.0
    %1523 = vmatpush2.msra.mxu0 0.0
    %1524 = vmatprep.subr.mxu0 0.0
    %1525 = vmatpush2.msra.mxu0 0.0
    %1526 = vmatprep.subr.mxu0 0.0
    %1527 = vmatpush2.msra.mxu0 0.0
    %1528 = vmatprep.subr.mxu0 0.0
    %1529 = vmatpush2.msra.mxu0 0.0
    %1530 = vmatprep.subr.mxu0 0.0
    %1531 = vmatpush2.msra.mxu0 0.0
    %1532 = vmatprep.subr.mxu0 0.0
    %1533 = vmatpush2.msra.mxu0 0.0
    %1534 = vmatprep.subr.mxu0 0.0
    %1535 = vmatpush2.msra.mxu0 0.0
    %1536 = vmatprep.mubr.f32.mxu0 0.0
    %1537 = vmatmul.mubr.f32.gmra.mxu0 %v1470
    %v1538 = vpop.f32.mrf.mxu0
    %v1539 = vadd.f32 %v1465, %v1538
    %v1540 = vpop.f32.mrf.mxu0
    %1541 = vdwg.mxu0
    %vm1542 = vcmask 123904
    %1543 = vst.msk [vmem:[#allocation8] sm:$0x3] %vm1542, %v1539
    // Predicated region
    $region42: #{tpu_custom_call.1} parent=1 // pred_check
      _
    $region43: #{tpu_custom_call.1} parent=1 // pred_check_branch
      %1545 = sbr.rel (0) target = $region45
    $region44: #{tpu_custom_call.1} parent=1 // pred_region
      %s1547 = ssub.s32 32, 32
      %1548 = vsyncadd [#allocation7], %s1547
      %s1550 = sshll.u32 [#allocation8], 4
      %s1551 = int_to_ptr.vmem [resolvable:$true] %s1550
      %1553 = dma.vmem_to_hbm [thread:$0]  %s1551, 32, %s9, [#allocation7]
    $region45: #{tpu_custom_call.1} parent=1 // pred_fallthru
      _
    // Predicated region
    $region46: #{tpu_custom_call.1} parent=1 // pred_check
      _
    $region47: #{tpu_custom_call.1} parent=1 // pred_check_branch
      %1555 = sbr.rel (0) target = $region49
    $region48: #{tpu_custom_call.1} parent=1 // pred_region
      %1556 = dma.done [#allocation7], 32
    $region49: #{tpu_custom_call.1} parent=1 // pred_fallthru
      _
    %1557 = vsyncpa [#allocation6], 1
    %1558 = vsyncpa [#allocation7], 1

</llo_original>
